<compile_context>
chip_gen: v5e
topology: v5e:2x2
jax: 0.10.0
libtpu: 0.0.40
codegen_flags: <defaults>
</compile_context>

<pallas_src>
import jax
import jax.numpy as jnp
from jax.experimental import pallas as pl
from jax.experimental.pallas import tpu as pltpu


def _add_pos_kernel(x_ref, pos_ref, o_ref):
    # x_ref/o_ref: (BT, TS, D) tiles; pos_ref: (TS, D) tile (size-1 batch dim
    # squeezed away). (TS, D) broadcasts against (BT, TS, D) for free on the VPU.
    o_ref[...] = x_ref[...] + pos_ref[...]


def _hw_params():
    """Generation-aware tiling knobs: (VMEM budget, vmem_limit, step target, even grid)."""
    vmem_cap = None
    try:
        vmem_cap = getattr(pltpu.get_tpu_info(), "vmem_capacity_bytes", None)
    except Exception:
        vmem_cap = None
    kind = ""
    try:
        kind = jax.devices()[0].device_kind.lower()
    except Exception:
        pass
    is_v7 = "7" in kind
    if vmem_cap is None:
        vmem_cap = (64 if is_v7 else 128) * 1024 * 1024

    if is_v7 or vmem_cap <= 64 * 1024 * 1024:
        # v7x: 64 MiB physical / 32 MiB default scoped VMEM per TC, 2 TensorCores.
        # Keep the conservative budget and ask for an even, >=4-step grid so the
        # "parallel" axis splits evenly across both cores.
        return dict(vmem_budget=24 << 20, vmem_limit=32 << 20,
                    target_steps=4, even_grid=True)
    # v5e / v6e: single TensorCore, 128 MiB physical VMEM. Bigger blocks, fewer
    # grid steps; the explicit (raised) vmem_limit also covers v5e's 16 MiB
    # default scoped limit.
    return dict(vmem_budget=64 << 20, vmem_limit=96 << 20,
                target_steps=2, even_grid=False)


def _choose_tiles(B, S, D, itemsize, *, vmem_budget, target_steps, even_grid):
    """Pick (batch_tile, seq_tile) for a (seq-outer, batch-inner) grid."""
    sublane = 8 * max(1, 4 // itemsize)  # f32 -> 8, bf16 -> 16, int8 -> 32

    def footprint(bt, st):
        # Double-buffered pipeline: x block + out block (bt rows each) + pos block.
        return 2 * (2 * bt + 1) * st * D * itemsize

    # Legal seq tiles: divide S and are sublane-aligned (or equal the full extent).
    seq_candidates = [t for t in range(1, S + 1)
                      if S % t == 0 and (t == S or t % sublane == 0)]

    def grid_ok(st):
        n = S // st
        if n < target_steps:
            return False
        if even_grid and (n % 2):
            return False
        return True

    # Preferred path: whole batch folded into each block, so the positional
    # table is read from HBM exactly once per sequence tile.
    fitting = [t for t in seq_candidates if footprint(B, t) <= vmem_budget]
    if fitting:
        preferred = [t for t in fitting if grid_ok(t)]
        return B, (max(preferred) if preferred else max(fitting))

    # Escape hatch for very large B*D: tile the batch axis too (inner grid dim,
    # so the pos block index stays constant there and the table stays resident).
    st = min(seq_candidates)
    for bt in sorted((b for b in range(1, B + 1) if B % b == 0), reverse=True):
        if footprint(bt, st) <= vmem_budget:
            return bt, st
    return 1, st  # pathological D; best effort.


def learned_positional_encoding(x, position_embeddings, *, seq_tile=None,
                                batch_tile=None, donate_x=False):
    """x: (B, S, D); position_embeddings: (1, S, D). Returns x + pos (broadcast over B).

    Set donate_x=True only if the caller actually donates x's buffer; otherwise
    the defensive copy XLA inserts would double HBM traffic.
    """
    B, S, D = x.shape
    assert position_embeddings.shape == (1, S, D)
    # Keep the add in the activation dtype (bf16 activations halve HBM traffic).
    position_embeddings = position_embeddings.astype(x.dtype)
    itemsize = jnp.dtype(x.dtype).itemsize

    hw = _hw_params()
    if seq_tile is None or batch_tile is None:
        bt, st = _choose_tiles(B, S, D, itemsize,
                               vmem_budget=hw["vmem_budget"],
                               target_steps=hw["target_steps"],
                               even_grid=hw["even_grid"])
        seq_tile = st if seq_tile is None else seq_tile
        batch_tile = bt if batch_tile is None else batch_tile
    assert S % seq_tile == 0, "seq length must be divisible by seq_tile"
    assert B % batch_tile == 0, "batch must be divisible by batch_tile"

    grid = (S // seq_tile, B // batch_tile)  # seq OUTER, batch INNER

    cost = pl.CostEstimate(
        flops=B * S * D,
        transcendentals=0,
        bytes_accessed=(2 * B * S * D + S * D) * itemsize,  # read x + pos, write out
    )

    return pl.pallas_call(
        _add_pos_kernel,
        out_shape=jax.ShapeDtypeStruct((B, S, D), x.dtype),
        grid=grid,
        in_specs=[
            # x: batch tile (usually the whole batch) x seq tile x full D.
            pl.BlockSpec((batch_tile, seq_tile, D), lambda s, b: (b, s, 0)),
            # positional table: size-1 batch dim squeezed -> lane-dense (TS, D)
            # tile; block index depends only on the OUTER seq index, so it stays
            # VMEM-resident across the inner batch axis (read once per seq tile).
            pl.BlockSpec((None, seq_tile, D), lambda s, b: (0, s, 0)),
        ],
        out_specs=pl.BlockSpec((batch_tile, seq_tile, D), lambda s, b: (b, s, 0)),
        # Only alias when the caller really donates x (avoids a defensive copy).
        input_output_aliases=({0: 0} if donate_x else {}),
        cost_estimate=cost,
        compiler_params=pltpu.CompilerParams(
            dimension_semantics=("parallel", "parallel"),
            vmem_limit_bytes=hw["vmem_limit"],
        ),
    )(x, position_embeddings)


if __name__ == "__main__":
    # Module config: img_dim != 224 -> position_embeddings shape (1, 1024, 512).
    SEQ = 1024
    EMB = 512
    BATCH = 2

    key = jax.random.PRNGKey(0)
    kx, kp = jax.random.split(key)

    x = jax.random.normal(kx, (BATCH, SEQ, EMB), dtype=jnp.float32)
    # nn.Parameter(torch.zeros(1, 1024, 512)) — use a deterministic non-zero init
    # so the add is actually exercised (the PyTorch value is learned anyway).
    position_embeddings = 0.01 * jax.random.normal(kp, (1, SEQ, EMB), dtype=jnp.float32)

    ref = x + position_embeddings

    out = learned_positional_encoding(x, position_embeddings)  # donate_x=False (no aliasing)
    out = jax.block_until_ready(out)

    assert out.shape == (BATCH, SEQ, EMB)
    assert out.dtype == ref.dtype
    assert jnp.allclose(out, ref, atol=1e-6, rtol=1e-6)

    print("KERNEL_OK")
</pallas_src>

<mosaic_0001>
module attributes {stable_mosaic.version = 11 : i64} {
  func.func @_add_pos_kernel(%arg0: i32, %arg1: i32, %arg2: memref<2x512x512xf32, #tpu.memory_space<vmem>>, %arg3: memref<1x512x512xf32, #tpu.memory_space<vmem>>, %arg4: memref<2x512x512xf32, #tpu.memory_space<vmem>>) attributes {dimension_semantics = [#tpu.dimension_semantics<parallel>, #tpu.dimension_semantics<parallel>], iteration_bounds = array<i64: 2, 1>, scalar_prefetch = 0 : i64, scratch_operands = 0 : i64, tpu.core_type = #tpu.core_type<tc>, window_params = [{transform_indices = @transform_0, window_bounds = array<i64: 2, 512, 512>}, {transform_indices = @transform_1, window_bounds = array<i64: 1, 512, 512>}, {transform_indices = @transform_2, window_bounds = array<i64: 2, 512, 512>}]} {
    %c0 = arith.constant 0 : index
    %c0_0 = arith.constant 0 : index
    %c0_1 = arith.constant 0 : index
    %0 = vector.load %arg2[%c0, %c0_0, %c0_1] : memref<2x512x512xf32, #tpu.memory_space<vmem>>, vector<2x512x512xf32>
    %c0_2 = arith.constant 0 : index
    %c0_3 = arith.constant 0 : index
    %c0_4 = arith.constant 0 : index
    %1 = vector.load %arg3[%c0_2, %c0_3, %c0_4] : memref<1x512x512xf32, #tpu.memory_space<vmem>>, vector<1x512x512xf32>
    %2 = vector.shape_cast %1 : vector<1x512x512xf32> to vector<512x512xf32>
    %3 = vector.shape_cast %2 : vector<512x512xf32> to vector<1x512x512xf32>
    %4 = vector.broadcast %3 : vector<1x512x512xf32> to vector<2x512x512xf32>
    %5 = arith.addf %0, %4 : vector<2x512x512xf32>
    %c0_5 = arith.constant 0 : index
    %c0_6 = arith.constant 0 : index
    %c0_7 = arith.constant 0 : index
    %6 = vector.load %arg4[%c0_5, %c0_6, %c0_7] : memref<2x512x512xf32, #tpu.memory_space<vmem>>, vector<2x512x512xf32>
    tpu.vector_store %arg4[%c0_5, %c0_6, %c0_7], %5 {strides = array<i32>} : memref<2x512x512xf32, #tpu.memory_space<vmem>>, vector<2x512x512xf32>,
    return
  }
  func.func @transform_0(%arg0: i32, %arg1: i32) -> (i32, i32, i32) {
    %c0_i32 = arith.constant 0 : i32
    %c0_i32_0 = arith.constant 0 : i32
    return %arg1, %arg0, %c0_i32 : i32, i32, i32
  }
  func.func @transform_1(%arg0: i32, %arg1: i32) -> (i32, i32, i32) {
    %c0_i32 = arith.constant 0 : i32
    %c0_i32_0 = arith.constant 0 : i32
    %c0_i32_1 = arith.constant 0 : i32
    return %c0_i32, %arg0, %c0_i32_0 : i32, i32, i32
  }
  func.func @transform_2(%arg0: i32, %arg1: i32) -> (i32, i32, i32) {
    %c0_i32 = arith.constant 0 : i32
    %c0_i32_0 = arith.constant 0 : i32
    return %arg1, %arg0, %c0_i32 : i32, i32, i32
  }
}

</mosaic_0001>

<llo_original>
// kernel: tpu_custom_call.1
$region0: #{tpu_custom_call.1}
  #allocation0 [shape = 'u32[]', space=smem, size = 0x4, offset = 0x4, fixed_abs, tag = 'smem constant byte address 0x4 - core index']
  #allocation1 [shape = 'u32[72,128]{1,0:T(1,128)}', space=vmem, size = 0x9000, scoped, tag = 'internal scratch']
  #allocation8 [shape = 's32[]', space=sflag, size = 0x4, offset = 0, fixed_abs, tag = 'sflag constant byte address 0x0 - dummy sync flag']
  #allocation10 [shape = 's32[]', space=sflag, size = 0x4, offset = 0, fixed_abs, tag = 'sflag constant byte address 0x0 - dummy sync flag']
  %s0 = inlined_call_operand.hbm [shape: f32[2,1024,512], index: 0, kind: input, shape index: {}]
  %s1 = inlined_call_operand.hbm [shape: f32[1,1024,512], index: 1, kind: input, shape index: {}]
  %s2 = inlined_call_operand.hbm [shape: f32[2,1024,512], index: 2, kind: output, shape index: {}]
  %s3 = sld [smem:[#allocation0]]
  $region49: #{tpu_custom_call.1} parent=0
    _
  %s5 = ssub.s32 1, %s3
  %s6 = scalar_select 0, %s5, %s3
  $region1: #{tpu_custom_call.1} parent=0
    #allocation2 [shape = 'u8[4194304]{0}', space=vmem, size = 0x400000, scoped, tag = 'input window, operand 0']
    #allocation3 [shape = 's32[2]{0}', space=sflag, size = 0x8, scoped, tag = 'scoped memory for tpu_custom_call.1']
    #allocation4 [shape = 's32[2]{0}', space=sflag, size = 0x8, scoped, tag = 'scoped memory for tpu_custom_call.1']
    #allocation5 [shape = 'u8[2097152]{0}', space=vmem, size = 0x200000, scoped, tag = 'input window, operand 1']
    #allocation6 [shape = 's32[2]{0}', space=sflag, size = 0x8, scoped, tag = 'scoped memory for tpu_custom_call.1']
    #allocation7 [shape = 'u8[4194304]{0}', space=vmem, size = 0x400000, scoped, tag = 'output window, operand 0']
    %7 = vsyncpa [#allocation3], 0
    %s8 = scalar_lea.sflag [#allocation3], 1
    %9 = vsyncpa %s8, 0
    %10 = vsyncpa [#allocation6], 0
    %s11 = scalar_lea.sflag [#allocation6], 1
    %12 = vsyncpa %s11, 0
    %13 = vsyncpa [#allocation4], 0
    %s14 = scalar_lea.sflag [#allocation4], 1
    %15 = vsyncpa %s14, 0
    loop: start=0, step=1, limit=4
    $region2: #{tpu_custom_call.1} parent=1 // loop_pre_header
      _
    $region3: #{tpu_custom_call.1} parent=1 // loop_header
      %s17 = sphi 0, %s21
      %p18 = scmp.ge.s32.totalorder %s17, 4
      %s24 = sphi 0, %s36
      %s25 = sphi 0, %s32
      %s26 = sphi 0, %s24
      %s27 = sphi 0, %s25
      %s28 = sphi 0, %s26
      %s29 = sphi 0, %s27
      %s41 = sphi 0, %s43
      %s44 = sphi 0, %s41
      %s45 = sphi 0, %s44
      %s61 = sphi 0, %s45
      %s67 = sphi 0, %s69
      %s70 = sphi 0, %s67
      %s71 = sphi 0, %s70
      %s87 = sphi 0, %s71
      %s95 = sphi 0, %s97
      %s98 = sphi 0, %s95
      %s99 = sphi 0, %s98
      %s115 = sphi 0, %s99
    $region4: #{tpu_custom_call.1} parent=1 // loop_header_branch
      %20 = sbr.rel (%p18) target = $region8
    $region5: #{tpu_custom_call.1} parent=1 // loop_body
      %s22 = ssub.s32 %s17, 1
      %s23 = ssub.s32 %s17, 2
      %s30 = sadd.s32 1, %s25
      %p31 = scmp.ge.s32.totalorder %s30, 1
      %s32 = scalar_select %p31, 0, %s30
      %s33 = sadd.s32 1, %s24
      %s34 = scalar_select %p31, %s33, %s24
      %p35 = scmp.ge.s32.totalorder %s34, 2
      %s36 = scalar_select %p35, 0, %s34
      %s37 = ssub.s32 %s25, %s32
      %s38 = ssub.s32 %s24, %s36
      %s39 = sor.u32 %s37, %s38
      %p40 = scmp.eq.s32.totalorder %s39, 0
      %s42 = sadd.s32 %s41, 1
      %s43 = scalar_select %p40, %s41, %s42
      %p46 = pneg %p40
      %p47 = scmp.eq.s32.totalorder %s17, 1
      %p48 = por %p46, %p47
      %p49 = scmp.ne.s32.totalorder %s41, %s44
      %p50 = scmp.eq.s32.totalorder %s17, 0
      %p51 = por %p49, %p50
      %p52 = scmp.ne.s32.totalorder %s41, %s44
      %p53 = scmp.eq.s32.totalorder %s22, 1
      %p54 = por %p52, %p53
      %p55 = scmp.ne.s32.totalorder %s44, %s45
      %p56 = scmp.eq.s32.totalorder %s22, 0
      %p57 = por %p55, %p56
      %p58 = scmp.ne.s32.totalorder %s44, %s45
      %p59 = scmp.eq.s32.totalorder %s23, 1
      %p60 = por %p58, %p59
      %p62 = scmp.ne.s32.totalorder %s45, %s61
      %p63 = scmp.eq.s32.totalorder %s23, 0
      %p64 = por %p62, %p63
      %s65 = ssub.s32 %s24, %s36
      %p66 = scmp.eq.s32.totalorder %s65, 0
      %s68 = sadd.s32 %s67, 1
      %s69 = scalar_select %p66, %s67, %s68
      %p72 = pneg %p66
      %p73 = scmp.eq.s32.totalorder %s17, 1
      %p74 = por %p72, %p73
      %p75 = scmp.ne.s32.totalorder %s67, %s70
      %p76 = scmp.eq.s32.totalorder %s17, 0
      %p77 = por %p75, %p76
      %p78 = scmp.ne.s32.totalorder %s67, %s70
      %p79 = scmp.eq.s32.totalorder %s22, 1
      %p80 = por %p78, %p79
      %p81 = scmp.ne.s32.totalorder %s70, %s71
      %p82 = scmp.eq.s32.totalorder %s22, 0
      %p83 = por %p81, %p82
      %p84 = scmp.ne.s32.totalorder %s70, %s71
      %p85 = scmp.eq.s32.totalorder %s23, 1
      %p86 = por %p84, %p85
      %p88 = scmp.ne.s32.totalorder %s71, %s87
      %p89 = scmp.eq.s32.totalorder %s23, 0
      %p90 = por %p88, %p89
      %s91 = ssub.s32 %s25, %s32
      %s92 = ssub.s32 %s24, %s36
      %s93 = sor.u32 %s91, %s92
      %p94 = scmp.eq.s32.totalorder %s93, 0
      %s96 = sadd.s32 %s95, 1
      %s97 = scalar_select %p94, %s95, %s96
      %p100 = pneg %p94
      %p101 = scmp.eq.s32.totalorder %s17, 1
      %p102 = por %p100, %p101
      %p103 = scmp.ne.s32.totalorder %s95, %s98
      %p104 = scmp.eq.s32.totalorder %s17, 0
      %p105 = por %p103, %p104
      %p106 = scmp.ne.s32.totalorder %s95, %s98
      %p107 = scmp.eq.s32.totalorder %s22, 1
      %p108 = por %p106, %p107
      %p109 = scmp.ne.s32.totalorder %s98, %s99
      %p110 = scmp.eq.s32.totalorder %s22, 0
      %p111 = por %p109, %p110
      %p112 = scmp.ne.s32.totalorder %s98, %s99
      %p113 = scmp.eq.s32.totalorder %s23, 1
      %p114 = por %p112, %p113
      %p116 = scmp.ne.s32.totalorder %s99, %s115
      %p117 = scmp.eq.s32.totalorder %s23, 0
      %p118 = por %p116, %p117
      %p119 = scmp.le.s32.totalorder 1, %s17
      %p120 = scmp.lt.s32.totalorder %s17, 3
      %p121 = pnand %p119, %p120
      %p122 = pneg %p121
      // Predicated region
      $region9: #{tpu_custom_call.1} parent=5 // pred_check
        _
      $region10: #{tpu_custom_call.1} parent=5 // pred_check_branch
        %124 = sbr.rel (%p121) target = $region12
      $region11: #{tpu_custom_call.1} parent=5 // pred_region
        %s125 = ssub.s32 %s17, 1
      $region12: #{tpu_custom_call.1} parent=5 // pred_fallthru
        _
      %p126 = scmp.lt.s32.totalorder %s17, 2
      // Predicated region
      $region13: #{tpu_custom_call.1} parent=5 // pred_check
        %p127 = pneg %p126
      $region14: #{tpu_custom_call.1} parent=5 // pred_check_branch
        %129 = sbr.rel (%p127) target = $region16
      $region15: #{tpu_custom_call.1} parent=5 // pred_region
        // Predicated region
        $region17: #{tpu_custom_call.1} parent=15 // pred_check
          %p130 = pneg %p51
        $region18: #{tpu_custom_call.1} parent=15 // pred_check_branch
          %132 = sbr.rel (%p130) target = $region20
        $region19: #{tpu_custom_call.1} parent=15 // pred_region
          #allocation9 [shape = 'u32[6]{0}', space=smem, size = 0x18, scoped, tag = 'DMA stride descriptor']
          %s133 = sand.u32 %s41, 1
          %s134 = scalar_lea.sflag [#allocation3], %s133
          %s135 = sand.u32 %s41, 1
          %s136 = smul.addr %s135, 4096
          %s137 = scalar_lea.vmem [#allocation2], %s136
          %s138 = smul.u32 2, %s25
          %s139 = smul.u32 64, %s24
          %141 = vsyncadd %s134, 0
          %s142 = smul.addr %s139, 4
          %s143 = smul.addr %s138, 512
          %s144 = sadd.s32 %s142, %s143
          %s145 = smul.addr %s144, 8
          %s146 = scalar_lea.hbm %s0, %s145
          %s148 = sshll.u32 1, 14
          %s149 = sxor.u32 4294967295, %s148
          %s151 = sld [smem:[#allocation0]]
          %s152 = sadd.s32 2, %s151
          %s154 = sshll.u32 7, 26
          %s155 = sxor.u32 4294967295, %s154
          %s156 = sand.u32 0, %s155
          %s157 = sshll.u32 %s152, 26
          %s158 = sor.u32 %s156, %s157
          %s159 = sshll.u32 %s146, 4
          %s160 = int_to_ptr.hbm [resolvable:$true] %s159
          %s161 = sshll.u32 %s137, 4
          %s162 = int_to_ptr.vmem [resolvable:$true] %s161
          %168 = sst [smem:[#allocation9]] 65536
          %s169 = scalar_lea.smem [#allocation9], 1
          %170 = sst [smem:[%s169]] 32768
          %s171 = scalar_lea.smem [#allocation9], 2
          %172 = sst [smem:[%s171]] 64
          %s173 = scalar_lea.smem [#allocation9], 3
          %174 = sst [smem:[%s173]] 512
          %s175 = scalar_lea.smem [#allocation9], 4
          %176 = sst [smem:[%s175]] 512
          %s177 = scalar_lea.smem [#allocation9], 5
          %178 = sst [smem:[%s177]] 32
          %180 = dma.general %s160, 65536, %s162, %s134, [#allocation8], [#allocation9], %s158, 0
        $region20: #{tpu_custom_call.1} parent=15 // pred_fallthru
          _
        // Predicated region
        $region21: #{tpu_custom_call.1} parent=15 // pred_check
          %p181 = pneg %p77
        $region22: #{tpu_custom_call.1} parent=15 // pred_check_branch
          %183 = sbr.rel (%p181) target = $region24
        $region23: #{tpu_custom_call.1} parent=15 // pred_region
          %s184 = sand.u32 %s67, 1
          %s185 = scalar_lea.sflag [#allocation6], %s184
          %s186 = sand.u32 %s67, 1
          %s187 = smul.addr %s186, 2048
          %s188 = scalar_lea.vmem [#allocation5], %s187
          %s189 = smul.u32 64, %s24
          %191 = vsyncadd %s185, 0
          %s192 = smul.addr %s189, 4
          %s193 = smul.addr %s192, 8
          %s194 = scalar_lea.hbm %s1, %s193
          %s195 = sshll.u32 %s194, 4
          %s196 = int_to_ptr.hbm [resolvable:$true] %s195
          %s197 = sshll.u32 %s188, 4
          %s198 = int_to_ptr.vmem [resolvable:$true] %s197
          %203 = dma.hbm_to_vmem [thread:$0]  %s196, 32768, %s198, %s185, 512, 512, 32
        $region24: #{tpu_custom_call.1} parent=15 // pred_fallthru
          _
      $region16: #{tpu_custom_call.1} parent=5 // pred_fallthru
        _
      %p204 = scmp.le.s32.totalorder 1, %s17
      %p205 = scmp.lt.s32.totalorder %s17, 3
      %p206 = pnand %p204, %p205
      %p207 = pneg %p206
      // Predicated region
      $region25: #{tpu_custom_call.1} parent=5 // pred_check
        _
      $region26: #{tpu_custom_call.1} parent=5 // pred_check_branch
        %209 = sbr.rel (%p206) target = $region28
      $region27: #{tpu_custom_call.1} parent=5 // pred_region
        %s210 = ssub.s32 %s17, 1
        %s211 = sand.u32 %s44, 1
        %s212 = scalar_lea.sflag [#allocation3], %s211
        %s213 = sand.u32 %s44, 1
        %s214 = smul.addr %s213, 4096
        %s215 = scalar_lea.vmem [#allocation2], %s214
        // Predicated region
        $region29: #{tpu_custom_call.1} parent=27 // pred_check
          %p216 = pneg %p57
        $region30: #{tpu_custom_call.1} parent=27 // pred_check_branch
          %218 = sbr.rel (%p216) target = $region32
        $region31: #{tpu_custom_call.1} parent=27 // pred_region
          %220 = dma.done %s212, 65536
        $region32: #{tpu_custom_call.1} parent=27 // pred_fallthru
          _
        %s221 = sand.u32 %s70, 1
        %s222 = scalar_lea.sflag [#allocation6], %s221
        %s223 = sand.u32 %s70, 1
        %s224 = smul.addr %s223, 2048
        %s225 = scalar_lea.vmem [#allocation5], %s224
        // Predicated region
        $region33: #{tpu_custom_call.1} parent=27 // pred_check
          %p226 = pneg %p83
        $region34: #{tpu_custom_call.1} parent=27 // pred_check_branch
          %228 = sbr.rel (%p226) target = $region36
        $region35: #{tpu_custom_call.1} parent=27 // pred_region
          %230 = dma.done %s222, 32768
        $region36: #{tpu_custom_call.1} parent=27 // pred_fallthru
          _
        %s231 = sand.u32 %s44, 1
        %s232 = scalar_lea.sflag [#allocation3], %s231
        %s233 = sand.u32 %s44, 1
        %s234 = smul.addr %s233, 4096
        %s235 = scalar_lea.vmem [#allocation2], %s234
        %p236 = pneg %p57
        %p237 = pneg %p54
        %s238 = sand.u32 %s70, 1
        %s239 = scalar_lea.sflag [#allocation6], %s238
        %s240 = sand.u32 %s70, 1
        %s241 = smul.addr %s240, 2048
        %s242 = scalar_lea.vmem [#allocation5], %s241
        %p243 = pneg %p83
        %p244 = pneg %p80
        %p245 = pneg %p111
        %p246 = pneg %p108
        %s247 = sand.u32 %s98, 1
        %s248 = scalar_lea.sflag [#allocation4], %s247
        %s249 = sand.u32 %s98, 1
        %s250 = smul.addr %s249, 4096
        %s251 = scalar_lea.vmem [#allocation7], %s250
        %s252 = smul.u32 2, %s27
        %s253 = smul.u32 64, %s26
        %s254 = smul.u32 64, %s26
        %s255 = smul.u32 2, %s27
        %s256 = smul.u32 64, %s26
        %v257 = vld [vmem:[%s215] sm:$0xff]
        %v258 = vld [vmem:[%s215 + $0x8] sm:$0xff]
        %v259 = vld [vmem:[%s215 + $0x10] sm:$0xff]
        %v260 = vld [vmem:[%s215 + $0x18] sm:$0xff]
        %v261 = vld [vmem:[%s215 + $0x20] sm:$0xff]
        %v262 = vld [vmem:[%s215 + $0x28] sm:$0xff]
        %v263 = vld [vmem:[%s215 + $0x30] sm:$0xff]
        %v264 = vld [vmem:[%s215 + $0x38] sm:$0xff]
        %v265 = vld [vmem:[%s215 + $0x40] sm:$0xff]
        %v266 = vld [vmem:[%s215 + $0x48] sm:$0xff]
        %v267 = vld [vmem:[%s215 + $0x50] sm:$0xff]
        %v268 = vld [vmem:[%s215 + $0x58] sm:$0xff]
        %v269 = vld [vmem:[%s215 + $0x60] sm:$0xff]
        %v270 = vld [vmem:[%s215 + $0x68] sm:$0xff]
        %v271 = vld [vmem:[%s215 + $0x70] sm:$0xff]
        %v272 = vld [vmem:[%s215 + $0x78] sm:$0xff]
        %v273 = vld [vmem:[%s215 + $0x80] sm:$0xff]
        %v274 = vld [vmem:[%s215 + $0x88] sm:$0xff]
        %v275 = vld [vmem:[%s215 + $0x90] sm:$0xff]
        %v276 = vld [vmem:[%s215 + $0x98] sm:$0xff]
        %v277 = vld [vmem:[%s215 + $0xa0] sm:$0xff]
        %v278 = vld [vmem:[%s215 + $0xa8] sm:$0xff]
        %v279 = vld [vmem:[%s215 + $0xb0] sm:$0xff]
        %v280 = vld [vmem:[%s215 + $0xb8] sm:$0xff]
        %v281 = vld [vmem:[%s215 + $0xc0] sm:$0xff]
        %v282 = vld [vmem:[%s215 + $0xc8] sm:$0xff]
        %v283 = vld [vmem:[%s215 + $0xd0] sm:$0xff]
        %v284 = vld [vmem:[%s215 + $0xd8] sm:$0xff]
        %v285 = vld [vmem:[%s215 + $0xe0] sm:$0xff]
        %v286 = vld [vmem:[%s215 + $0xe8] sm:$0xff]
        %v287 = vld [vmem:[%s215 + $0xf0] sm:$0xff]
        %v288 = vld [vmem:[%s215 + $0xf8] sm:$0xff]
        %v289 = vld [vmem:[%s215 + $0x100] sm:$0xff]
        %v290 = vld [vmem:[%s215 + $0x108] sm:$0xff]
        %v291 = vld [vmem:[%s215 + $0x110] sm:$0xff]
        %v292 = vld [vmem:[%s215 + $0x118] sm:$0xff]
        %v293 = vld [vmem:[%s215 + $0x120] sm:$0xff]
        %v294 = vld [vmem:[%s215 + $0x128] sm:$0xff]
        %v295 = vld [vmem:[%s215 + $0x130] sm:$0xff]
        %v296 = vld [vmem:[%s215 + $0x138] sm:$0xff]
        %v297 = vld [vmem:[%s215 + $0x140] sm:$0xff]
        %v298 = vld [vmem:[%s215 + $0x148] sm:$0xff]
        %v299 = vld [vmem:[%s215 + $0x150] sm:$0xff]
        %v300 = vld [vmem:[%s215 + $0x158] sm:$0xff]
        %v301 = vld [vmem:[%s215 + $0x160] sm:$0xff]
        %v302 = vld [vmem:[%s215 + $0x168] sm:$0xff]
        %v303 = vld [vmem:[%s215 + $0x170] sm:$0xff]
        %v304 = vld [vmem:[%s215 + $0x178] sm:$0xff]
        %v305 = vld [vmem:[%s215 + $0x180] sm:$0xff]
        %v306 = vld [vmem:[%s215 + $0x188] sm:$0xff]
        %v307 = vld [vmem:[%s215 + $0x190] sm:$0xff]
        %v308 = vld [vmem:[%s215 + $0x198] sm:$0xff]
        %v309 = vld [vmem:[%s215 + $0x1a0] sm:$0xff]
        %v310 = vld [vmem:[%s215 + $0x1a8] sm:$0xff]
        %v311 = vld [vmem:[%s215 + $0x1b0] sm:$0xff]
        %v312 = vld [vmem:[%s215 + $0x1b8] sm:$0xff]
        %v313 = vld [vmem:[%s215 + $0x1c0] sm:$0xff]
        %v314 = vld [vmem:[%s215 + $0x1c8] sm:$0xff]
        %v315 = vld [vmem:[%s215 + $0x1d0] sm:$0xff]
        %v316 = vld [vmem:[%s215 + $0x1d8] sm:$0xff]
        %v317 = vld [vmem:[%s215 + $0x1e0] sm:$0xff]
        %v318 = vld [vmem:[%s215 + $0x1e8] sm:$0xff]
        %v319 = vld [vmem:[%s215 + $0x1f0] sm:$0xff]
        %v320 = vld [vmem:[%s215 + $0x1f8] sm:$0xff]
        %v321 = vld [vmem:[%s215 + $0x200] sm:$0xff]
        %v322 = vld [vmem:[%s215 + $0x208] sm:$0xff]
        %v323 = vld [vmem:[%s215 + $0x210] sm:$0xff]
        %v324 = vld [vmem:[%s215 + $0x218] sm:$0xff]
        %v325 = vld [vmem:[%s215 + $0x220] sm:$0xff]
        %v326 = vld [vmem:[%s215 + $0x228] sm:$0xff]
        %v327 = vld [vmem:[%s215 + $0x230] sm:$0xff]
        %v328 = vld [vmem:[%s215 + $0x238] sm:$0xff]
        %v329 = vld [vmem:[%s215 + $0x240] sm:$0xff]
        %v330 = vld [vmem:[%s215 + $0x248] sm:$0xff]
        %v331 = vld [vmem:[%s215 + $0x250] sm:$0xff]
        %v332 = vld [vmem:[%s215 + $0x258] sm:$0xff]
        %v333 = vld [vmem:[%s215 + $0x260] sm:$0xff]
        %v334 = vld [vmem:[%s215 + $0x268] sm:$0xff]
        %v335 = vld [vmem:[%s215 + $0x270] sm:$0xff]
        %v336 = vld [vmem:[%s215 + $0x278] sm:$0xff]
        %v337 = vld [vmem:[%s215 + $0x280] sm:$0xff]
        %v338 = vld [vmem:[%s215 + $0x288] sm:$0xff]
        %v339 = vld [vmem:[%s215 + $0x290] sm:$0xff]
        %v340 = vld [vmem:[%s215 + $0x298] sm:$0xff]
        %v341 = vld [vmem:[%s215 + $0x2a0] sm:$0xff]
        %v342 = vld [vmem:[%s215 + $0x2a8] sm:$0xff]
        %v343 = vld [vmem:[%s215 + $0x2b0] sm:$0xff]
        %v344 = vld [vmem:[%s215 + $0x2b8] sm:$0xff]
        %v345 = vld [vmem:[%s215 + $0x2c0] sm:$0xff]
        %v346 = vld [vmem:[%s215 + $0x2c8] sm:$0xff]
        %v347 = vld [vmem:[%s215 + $0x2d0] sm:$0xff]
        %v348 = vld [vmem:[%s215 + $0x2d8] sm:$0xff]
        %v349 = vld [vmem:[%s215 + $0x2e0] sm:$0xff]
        %v350 = vld [vmem:[%s215 + $0x2e8] sm:$0xff]
        %v351 = vld [vmem:[%s215 + $0x2f0] sm:$0xff]
        %v352 = vld [vmem:[%s215 + $0x2f8] sm:$0xff]
        %v353 = vld [vmem:[%s215 + $0x300] sm:$0xff]
        %v354 = vld [vmem:[%s215 + $0x308] sm:$0xff]
        %v355 = vld [vmem:[%s215 + $0x310] sm:$0xff]
        %v356 = vld [vmem:[%s215 + $0x318] sm:$0xff]
        %v357 = vld [vmem:[%s215 + $0x320] sm:$0xff]
        %v358 = vld [vmem:[%s215 + $0x328] sm:$0xff]
        %v359 = vld [vmem:[%s215 + $0x330] sm:$0xff]
        %v360 = vld [vmem:[%s215 + $0x338] sm:$0xff]
        %v361 = vld [vmem:[%s215 + $0x340] sm:$0xff]
        %v362 = vld [vmem:[%s215 + $0x348] sm:$0xff]
        %v363 = vld [vmem:[%s215 + $0x350] sm:$0xff]
        %v364 = vld [vmem:[%s215 + $0x358] sm:$0xff]
        %v365 = vld [vmem:[%s215 + $0x360] sm:$0xff]
        %v366 = vld [vmem:[%s215 + $0x368] sm:$0xff]
        %v367 = vld [vmem:[%s215 + $0x370] sm:$0xff]
        %v368 = vld [vmem:[%s215 + $0x378] sm:$0xff]
        %v369 = vld [vmem:[%s215 + $0x380] sm:$0xff]
        %v370 = vld [vmem:[%s215 + $0x388] sm:$0xff]
        %v371 = vld [vmem:[%s215 + $0x390] sm:$0xff]
        %v372 = vld [vmem:[%s215 + $0x398] sm:$0xff]
        %v373 = vld [vmem:[%s215 + $0x3a0] sm:$0xff]
        %v374 = vld [vmem:[%s215 + $0x3a8] sm:$0xff]
        %v375 = vld [vmem:[%s215 + $0x3b0] sm:$0xff]
        %v376 = vld [vmem:[%s215 + $0x3b8] sm:$0xff]
        %v377 = vld [vmem:[%s215 + $0x3c0] sm:$0xff]
        %v378 = vld [vmem:[%s215 + $0x3c8] sm:$0xff]
        %v379 = vld [vmem:[%s215 + $0x3d0] sm:$0xff]
        %v380 = vld [vmem:[%s215 + $0x3d8] sm:$0xff]
        %v381 = vld [vmem:[%s215 + $0x3e0] sm:$0xff]
        %v382 = vld [vmem:[%s215 + $0x3e8] sm:$0xff]
        %v383 = vld [vmem:[%s215 + $0x3f0] sm:$0xff]
        %v384 = vld [vmem:[%s215 + $0x3f8] sm:$0xff]
        %v385 = vld [vmem:[%s215 + $0x400] sm:$0xff]
        %v386 = vld [vmem:[%s215 + $0x408] sm:$0xff]
        %v387 = vld [vmem:[%s215 + $0x410] sm:$0xff]
        %v388 = vld [vmem:[%s215 + $0x418] sm:$0xff]
        %v389 = vld [vmem:[%s215 + $0x420] sm:$0xff]
        %v390 = vld [vmem:[%s215 + $0x428] sm:$0xff]
        %v391 = vld [vmem:[%s215 + $0x430] sm:$0xff]
        %v392 = vld [vmem:[%s215 + $0x438] sm:$0xff]
        %v393 = vld [vmem:[%s215 + $0x440] sm:$0xff]
        %v394 = vld [vmem:[%s215 + $0x448] sm:$0xff]
        %v395 = vld [vmem:[%s215 + $0x450] sm:$0xff]
        %v396 = vld [vmem:[%s215 + $0x458] sm:$0xff]
        %v397 = vld [vmem:[%s215 + $0x460] sm:$0xff]
        %v398 = vld [vmem:[%s215 + $0x468] sm:$0xff]
        %v399 = vld [vmem:[%s215 + $0x470] sm:$0xff]
        %v400 = vld [vmem:[%s215 + $0x478] sm:$0xff]
        %v401 = vld [vmem:[%s215 + $0x480] sm:$0xff]
        %v402 = vld [vmem:[%s215 + $0x488] sm:$0xff]
        %v403 = vld [vmem:[%s215 + $0x490] sm:$0xff]
        %v404 = vld [vmem:[%s215 + $0x498] sm:$0xff]
        %v405 = vld [vmem:[%s215 + $0x4a0] sm:$0xff]
        %v406 = vld [vmem:[%s215 + $0x4a8] sm:$0xff]
        %v407 = vld [vmem:[%s215 + $0x4b0] sm:$0xff]
        %v408 = vld [vmem:[%s215 + $0x4b8] sm:$0xff]
        %v409 = vld [vmem:[%s215 + $0x4c0] sm:$0xff]
        %v410 = vld [vmem:[%s215 + $0x4c8] sm:$0xff]
        %v411 = vld [vmem:[%s215 + $0x4d0] sm:$0xff]
        %v412 = vld [vmem:[%s215 + $0x4d8] sm:$0xff]
        %v413 = vld [vmem:[%s215 + $0x4e0] sm:$0xff]
        %v414 = vld [vmem:[%s215 + $0x4e8] sm:$0xff]
        %v415 = vld [vmem:[%s215 + $0x4f0] sm:$0xff]
        %v416 = vld [vmem:[%s215 + $0x4f8] sm:$0xff]
        %v417 = vld [vmem:[%s215 + $0x500] sm:$0xff]
        %v418 = vld [vmem:[%s215 + $0x508] sm:$0xff]
        %v419 = vld [vmem:[%s215 + $0x510] sm:$0xff]
        %v420 = vld [vmem:[%s215 + $0x518] sm:$0xff]
        %v421 = vld [vmem:[%s215 + $0x520] sm:$0xff]
        %v422 = vld [vmem:[%s215 + $0x528] sm:$0xff]
        %v423 = vld [vmem:[%s215 + $0x530] sm:$0xff]
        %v424 = vld [vmem:[%s215 + $0x538] sm:$0xff]
        %v425 = vld [vmem:[%s215 + $0x540] sm:$0xff]
        %v426 = vld [vmem:[%s215 + $0x548] sm:$0xff]
        %v427 = vld [vmem:[%s215 + $0x550] sm:$0xff]
        %v428 = vld [vmem:[%s215 + $0x558] sm:$0xff]
        %v429 = vld [vmem:[%s215 + $0x560] sm:$0xff]
        %v430 = vld [vmem:[%s215 + $0x568] sm:$0xff]
        %v431 = vld [vmem:[%s215 + $0x570] sm:$0xff]
        %v432 = vld [vmem:[%s215 + $0x578] sm:$0xff]
        %v433 = vld [vmem:[%s215 + $0x580] sm:$0xff]
        %v434 = vld [vmem:[%s215 + $0x588] sm:$0xff]
        %v435 = vld [vmem:[%s215 + $0x590] sm:$0xff]
        %v436 = vld [vmem:[%s215 + $0x598] sm:$0xff]
        %v437 = vld [vmem:[%s215 + $0x5a0] sm:$0xff]
        %v438 = vld [vmem:[%s215 + $0x5a8] sm:$0xff]
        %v439 = vld [vmem:[%s215 + $0x5b0] sm:$0xff]
        %v440 = vld [vmem:[%s215 + $0x5b8] sm:$0xff]
        %v441 = vld [vmem:[%s215 + $0x5c0] sm:$0xff]
        %v442 = vld [vmem:[%s215 + $0x5c8] sm:$0xff]
        %v443 = vld [vmem:[%s215 + $0x5d0] sm:$0xff]
        %v444 = vld [vmem:[%s215 + $0x5d8] sm:$0xff]
        %v445 = vld [vmem:[%s215 + $0x5e0] sm:$0xff]
        %v446 = vld [vmem:[%s215 + $0x5e8] sm:$0xff]
        %v447 = vld [vmem:[%s215 + $0x5f0] sm:$0xff]
        %v448 = vld [vmem:[%s215 + $0x5f8] sm:$0xff]
        %v449 = vld [vmem:[%s215 + $0x600] sm:$0xff]
        %v450 = vld [vmem:[%s215 + $0x608] sm:$0xff]
        %v451 = vld [vmem:[%s215 + $0x610] sm:$0xff]
        %v452 = vld [vmem:[%s215 + $0x618] sm:$0xff]
        %v453 = vld [vmem:[%s215 + $0x620] sm:$0xff]
        %v454 = vld [vmem:[%s215 + $0x628] sm:$0xff]
        %v455 = vld [vmem:[%s215 + $0x630] sm:$0xff]
        %v456 = vld [vmem:[%s215 + $0x638] sm:$0xff]
        %v457 = vld [vmem:[%s215 + $0x640] sm:$0xff]
        %v458 = vld [vmem:[%s215 + $0x648] sm:$0xff]
        %v459 = vld [vmem:[%s215 + $0x650] sm:$0xff]
        %v460 = vld [vmem:[%s215 + $0x658] sm:$0xff]
        %v461 = vld [vmem:[%s215 + $0x660] sm:$0xff]
        %v462 = vld [vmem:[%s215 + $0x668] sm:$0xff]
        %v463 = vld [vmem:[%s215 + $0x670] sm:$0xff]
        %v464 = vld [vmem:[%s215 + $0x678] sm:$0xff]
        %v465 = vld [vmem:[%s215 + $0x680] sm:$0xff]
        %v466 = vld [vmem:[%s215 + $0x688] sm:$0xff]
        %v467 = vld [vmem:[%s215 + $0x690] sm:$0xff]
        %v468 = vld [vmem:[%s215 + $0x698] sm:$0xff]
        %v469 = vld [vmem:[%s215 + $0x6a0] sm:$0xff]
        %v470 = vld [vmem:[%s215 + $0x6a8] sm:$0xff]
        %v471 = vld [vmem:[%s215 + $0x6b0] sm:$0xff]
        %v472 = vld [vmem:[%s215 + $0x6b8] sm:$0xff]
        %v473 = vld [vmem:[%s215 + $0x6c0] sm:$0xff]
        %v474 = vld [vmem:[%s215 + $0x6c8] sm:$0xff]
        %v475 = vld [vmem:[%s215 + $0x6d0] sm:$0xff]
        %v476 = vld [vmem:[%s215 + $0x6d8] sm:$0xff]
        %v477 = vld [vmem:[%s215 + $0x6e0] sm:$0xff]
        %v478 = vld [vmem:[%s215 + $0x6e8] sm:$0xff]
        %v479 = vld [vmem:[%s215 + $0x6f0] sm:$0xff]
        %v480 = vld [vmem:[%s215 + $0x6f8] sm:$0xff]
        %v481 = vld [vmem:[%s215 + $0x700] sm:$0xff]
        %v482 = vld [vmem:[%s215 + $0x708] sm:$0xff]
        %v483 = vld [vmem:[%s215 + $0x710] sm:$0xff]
        %v484 = vld [vmem:[%s215 + $0x718] sm:$0xff]
        %v485 = vld [vmem:[%s215 + $0x720] sm:$0xff]
        %v486 = vld [vmem:[%s215 + $0x728] sm:$0xff]
        %v487 = vld [vmem:[%s215 + $0x730] sm:$0xff]
        %v488 = vld [vmem:[%s215 + $0x738] sm:$0xff]
        %v489 = vld [vmem:[%s215 + $0x740] sm:$0xff]
        %v490 = vld [vmem:[%s215 + $0x748] sm:$0xff]
        %v491 = vld [vmem:[%s215 + $0x750] sm:$0xff]
        %v492 = vld [vmem:[%s215 + $0x758] sm:$0xff]
        %v493 = vld [vmem:[%s215 + $0x760] sm:$0xff]
        %v494 = vld [vmem:[%s215 + $0x768] sm:$0xff]
        %v495 = vld [vmem:[%s215 + $0x770] sm:$0xff]
        %v496 = vld [vmem:[%s215 + $0x778] sm:$0xff]
        %v497 = vld [vmem:[%s215 + $0x780] sm:$0xff]
        %v498 = vld [vmem:[%s215 + $0x788] sm:$0xff]
        %v499 = vld [vmem:[%s215 + $0x790] sm:$0xff]
        %v500 = vld [vmem:[%s215 + $0x798] sm:$0xff]
        %v501 = vld [vmem:[%s215 + $0x7a0] sm:$0xff]
        %v502 = vld [vmem:[%s215 + $0x7a8] sm:$0xff]
        %v503 = vld [vmem:[%s215 + $0x7b0] sm:$0xff]
        %v504 = vld [vmem:[%s215 + $0x7b8] sm:$0xff]
        %v505 = vld [vmem:[%s215 + $0x7c0] sm:$0xff]
        %v506 = vld [vmem:[%s215 + $0x7c8] sm:$0xff]
        %v507 = vld [vmem:[%s215 + $0x7d0] sm:$0xff]
        %v508 = vld [vmem:[%s215 + $0x7d8] sm:$0xff]
        %v509 = vld [vmem:[%s215 + $0x7e0] sm:$0xff]
        %v510 = vld [vmem:[%s215 + $0x7e8] sm:$0xff]
        %v511 = vld [vmem:[%s215 + $0x7f0] sm:$0xff]
        %v512 = vld [vmem:[%s215 + $0x7f8] sm:$0xff]
        %v513 = vld [vmem:[%s215 + $0x800] sm:$0xff]
        %v514 = vld [vmem:[%s215 + $0x808] sm:$0xff]
        %v515 = vld [vmem:[%s215 + $0x810] sm:$0xff]
        %v516 = vld [vmem:[%s215 + $0x818] sm:$0xff]
        %v517 = vld [vmem:[%s215 + $0x820] sm:$0xff]
        %v518 = vld [vmem:[%s215 + $0x828] sm:$0xff]
        %v519 = vld [vmem:[%s215 + $0x830] sm:$0xff]
        %v520 = vld [vmem:[%s215 + $0x838] sm:$0xff]
        %v521 = vld [vmem:[%s215 + $0x840] sm:$0xff]
        %v522 = vld [vmem:[%s215 + $0x848] sm:$0xff]
        %v523 = vld [vmem:[%s215 + $0x850] sm:$0xff]
        %v524 = vld [vmem:[%s215 + $0x858] sm:$0xff]
        %v525 = vld [vmem:[%s215 + $0x860] sm:$0xff]
        %v526 = vld [vmem:[%s215 + $0x868] sm:$0xff]
        %v527 = vld [vmem:[%s215 + $0x870] sm:$0xff]
        %v528 = vld [vmem:[%s215 + $0x878] sm:$0xff]
        %v529 = vld [vmem:[%s215 + $0x880] sm:$0xff]
        %v530 = vld [vmem:[%s215 + $0x888] sm:$0xff]
        %v531 = vld [vmem:[%s215 + $0x890] sm:$0xff]
        %v532 = vld [vmem:[%s215 + $0x898] sm:$0xff]
        %v533 = vld [vmem:[%s215 + $0x8a0] sm:$0xff]
        %v534 = vld [vmem:[%s215 + $0x8a8] sm:$0xff]
        %v535 = vld [vmem:[%s215 + $0x8b0] sm:$0xff]
        %v536 = vld [vmem:[%s215 + $0x8b8] sm:$0xff]
        %v537 = vld [vmem:[%s215 + $0x8c0] sm:$0xff]
        %v538 = vld [vmem:[%s215 + $0x8c8] sm:$0xff]
        %v539 = vld [vmem:[%s215 + $0x8d0] sm:$0xff]
        %v540 = vld [vmem:[%s215 + $0x8d8] sm:$0xff]
        %v541 = vld [vmem:[%s215 + $0x8e0] sm:$0xff]
        %v542 = vld [vmem:[%s215 + $0x8e8] sm:$0xff]
        %v543 = vld [vmem:[%s215 + $0x8f0] sm:$0xff]
        %v544 = vld [vmem:[%s215 + $0x8f8] sm:$0xff]
        %v545 = vld [vmem:[%s215 + $0x900] sm:$0xff]
        %v546 = vld [vmem:[%s215 + $0x908] sm:$0xff]
        %v547 = vld [vmem:[%s215 + $0x910] sm:$0xff]
        %v548 = vld [vmem:[%s215 + $0x918] sm:$0xff]
        %v549 = vld [vmem:[%s215 + $0x920] sm:$0xff]
        %v550 = vld [vmem:[%s215 + $0x928] sm:$0xff]
        %v551 = vld [vmem:[%s215 + $0x930] sm:$0xff]
        %v552 = vld [vmem:[%s215 + $0x938] sm:$0xff]
        %v553 = vld [vmem:[%s215 + $0x940] sm:$0xff]
        %v554 = vld [vmem:[%s215 + $0x948] sm:$0xff]
        %v555 = vld [vmem:[%s215 + $0x950] sm:$0xff]
        %v556 = vld [vmem:[%s215 + $0x958] sm:$0xff]
        %v557 = vld [vmem:[%s215 + $0x960] sm:$0xff]
        %v558 = vld [vmem:[%s215 + $0x968] sm:$0xff]
        %v559 = vld [vmem:[%s215 + $0x970] sm:$0xff]
        %v560 = vld [vmem:[%s215 + $0x978] sm:$0xff]
        %v561 = vld [vmem:[%s215 + $0x980] sm:$0xff]
        %v562 = vld [vmem:[%s215 + $0x988] sm:$0xff]
        %v563 = vld [vmem:[%s215 + $0x990] sm:$0xff]
        %v564 = vld [vmem:[%s215 + $0x998] sm:$0xff]
        %v565 = vld [vmem:[%s215 + $0x9a0] sm:$0xff]
        %v566 = vld [vmem:[%s215 + $0x9a8] sm:$0xff]
        %v567 = vld [vmem:[%s215 + $0x9b0] sm:$0xff]
        %v568 = vld [vmem:[%s215 + $0x9b8] sm:$0xff]
        %v569 = vld [vmem:[%s215 + $0x9c0] sm:$0xff]
        %v570 = vld [vmem:[%s215 + $0x9c8] sm:$0xff]
        %v571 = vld [vmem:[%s215 + $0x9d0] sm:$0xff]
        %v572 = vld [vmem:[%s215 + $0x9d8] sm:$0xff]
        %v573 = vld [vmem:[%s215 + $0x9e0] sm:$0xff]
        %v574 = vld [vmem:[%s215 + $0x9e8] sm:$0xff]
        %v575 = vld [vmem:[%s215 + $0x9f0] sm:$0xff]
        %v576 = vld [vmem:[%s215 + $0x9f8] sm:$0xff]
        %v577 = vld [vmem:[%s215 + $0xa00] sm:$0xff]
        %v578 = vld [vmem:[%s215 + $0xa08] sm:$0xff]
        %v579 = vld [vmem:[%s215 + $0xa10] sm:$0xff]
        %v580 = vld [vmem:[%s215 + $0xa18] sm:$0xff]
        %v581 = vld [vmem:[%s215 + $0xa20] sm:$0xff]
        %v582 = vld [vmem:[%s215 + $0xa28] sm:$0xff]
        %v583 = vld [vmem:[%s215 + $0xa30] sm:$0xff]
        %v584 = vld [vmem:[%s215 + $0xa38] sm:$0xff]
        %v585 = vld [vmem:[%s215 + $0xa40] sm:$0xff]
        %v586 = vld [vmem:[%s215 + $0xa48] sm:$0xff]
        %v587 = vld [vmem:[%s215 + $0xa50] sm:$0xff]
        %v588 = vld [vmem:[%s215 + $0xa58] sm:$0xff]
        %v589 = vld [vmem:[%s215 + $0xa60] sm:$0xff]
        %v590 = vld [vmem:[%s215 + $0xa68] sm:$0xff]
        %v591 = vld [vmem:[%s215 + $0xa70] sm:$0xff]
        %v592 = vld [vmem:[%s215 + $0xa78] sm:$0xff]
        %v593 = vld [vmem:[%s215 + $0xa80] sm:$0xff]
        %v594 = vld [vmem:[%s215 + $0xa88] sm:$0xff]
        %v595 = vld [vmem:[%s215 + $0xa90] sm:$0xff]
        %v596 = vld [vmem:[%s215 + $0xa98] sm:$0xff]
        %v597 = vld [vmem:[%s215 + $0xaa0] sm:$0xff]
        %v598 = vld [vmem:[%s215 + $0xaa8] sm:$0xff]
        %v599 = vld [vmem:[%s215 + $0xab0] sm:$0xff]
        %v600 = vld [vmem:[%s215 + $0xab8] sm:$0xff]
        %v601 = vld [vmem:[%s215 + $0xac0] sm:$0xff]
        %v602 = vld [vmem:[%s215 + $0xac8] sm:$0xff]
        %v603 = vld [vmem:[%s215 + $0xad0] sm:$0xff]
        %v604 = vld [vmem:[%s215 + $0xad8] sm:$0xff]
        %v605 = vld [vmem:[%s215 + $0xae0] sm:$0xff]
        %v606 = vld [vmem:[%s215 + $0xae8] sm:$0xff]
        %v607 = vld [vmem:[%s215 + $0xaf0] sm:$0xff]
        %v608 = vld [vmem:[%s215 + $0xaf8] sm:$0xff]
        %v609 = vld [vmem:[%s215 + $0xb00] sm:$0xff]
        %v610 = vld [vmem:[%s215 + $0xb08] sm:$0xff]
        %v611 = vld [vmem:[%s215 + $0xb10] sm:$0xff]
        %v612 = vld [vmem:[%s215 + $0xb18] sm:$0xff]
        %v613 = vld [vmem:[%s215 + $0xb20] sm:$0xff]
        %v614 = vld [vmem:[%s215 + $0xb28] sm:$0xff]
        %v615 = vld [vmem:[%s215 + $0xb30] sm:$0xff]
        %v616 = vld [vmem:[%s215 + $0xb38] sm:$0xff]
        %v617 = vld [vmem:[%s215 + $0xb40] sm:$0xff]
        %v618 = vld [vmem:[%s215 + $0xb48] sm:$0xff]
        %v619 = vld [vmem:[%s215 + $0xb50] sm:$0xff]
        %v620 = vld [vmem:[%s215 + $0xb58] sm:$0xff]
        %v621 = vld [vmem:[%s215 + $0xb60] sm:$0xff]
        %v622 = vld [vmem:[%s215 + $0xb68] sm:$0xff]
        %v623 = vld [vmem:[%s215 + $0xb70] sm:$0xff]
        %v624 = vld [vmem:[%s215 + $0xb78] sm:$0xff]
        %v625 = vld [vmem:[%s215 + $0xb80] sm:$0xff]
        %v626 = vld [vmem:[%s215 + $0xb88] sm:$0xff]
        %v627 = vld [vmem:[%s215 + $0xb90] sm:$0xff]
        %v628 = vld [vmem:[%s215 + $0xb98] sm:$0xff]
        %v629 = vld [vmem:[%s215 + $0xba0] sm:$0xff]
        %v630 = vld [vmem:[%s215 + $0xba8] sm:$0xff]
        %v631 = vld [vmem:[%s215 + $0xbb0] sm:$0xff]
        %v632 = vld [vmem:[%s215 + $0xbb8] sm:$0xff]
        %v633 = vld [vmem:[%s215 + $0xbc0] sm:$0xff]
        %v634 = vld [vmem:[%s215 + $0xbc8] sm:$0xff]
        %v635 = vld [vmem:[%s215 + $0xbd0] sm:$0xff]
        %v636 = vld [vmem:[%s215 + $0xbd8] sm:$0xff]
        %v637 = vld [vmem:[%s215 + $0xbe0] sm:$0xff]
        %v638 = vld [vmem:[%s215 + $0xbe8] sm:$0xff]
        %v639 = vld [vmem:[%s215 + $0xbf0] sm:$0xff]
        %v640 = vld [vmem:[%s215 + $0xbf8] sm:$0xff]
        %v641 = vld [vmem:[%s215 + $0xc00] sm:$0xff]
        %v642 = vld [vmem:[%s215 + $0xc08] sm:$0xff]
        %v643 = vld [vmem:[%s215 + $0xc10] sm:$0xff]
        %v644 = vld [vmem:[%s215 + $0xc18] sm:$0xff]
        %v645 = vld [vmem:[%s215 + $0xc20] sm:$0xff]
        %v646 = vld [vmem:[%s215 + $0xc28] sm:$0xff]
        %v647 = vld [vmem:[%s215 + $0xc30] sm:$0xff]
        %v648 = vld [vmem:[%s215 + $0xc38] sm:$0xff]
        %v649 = vld [vmem:[%s215 + $0xc40] sm:$0xff]
        %v650 = vld [vmem:[%s215 + $0xc48] sm:$0xff]
        %v651 = vld [vmem:[%s215 + $0xc50] sm:$0xff]
        %v652 = vld [vmem:[%s215 + $0xc58] sm:$0xff]
        %v653 = vld [vmem:[%s215 + $0xc60] sm:$0xff]
        %v654 = vld [vmem:[%s215 + $0xc68] sm:$0xff]
        %v655 = vld [vmem:[%s215 + $0xc70] sm:$0xff]
        %v656 = vld [vmem:[%s215 + $0xc78] sm:$0xff]
        %v657 = vld [vmem:[%s215 + $0xc80] sm:$0xff]
        %v658 = vld [vmem:[%s215 + $0xc88] sm:$0xff]
        %v659 = vld [vmem:[%s215 + $0xc90] sm:$0xff]
        %v660 = vld [vmem:[%s215 + $0xc98] sm:$0xff]
        %v661 = vld [vmem:[%s215 + $0xca0] sm:$0xff]
        %v662 = vld [vmem:[%s215 + $0xca8] sm:$0xff]
        %v663 = vld [vmem:[%s215 + $0xcb0] sm:$0xff]
        %v664 = vld [vmem:[%s215 + $0xcb8] sm:$0xff]
        %v665 = vld [vmem:[%s215 + $0xcc0] sm:$0xff]
        %v666 = vld [vmem:[%s215 + $0xcc8] sm:$0xff]
        %v667 = vld [vmem:[%s215 + $0xcd0] sm:$0xff]
        %v668 = vld [vmem:[%s215 + $0xcd8] sm:$0xff]
        %v669 = vld [vmem:[%s215 + $0xce0] sm:$0xff]
        %v670 = vld [vmem:[%s215 + $0xce8] sm:$0xff]
        %v671 = vld [vmem:[%s215 + $0xcf0] sm:$0xff]
        %v672 = vld [vmem:[%s215 + $0xcf8] sm:$0xff]
        %v673 = vld [vmem:[%s215 + $0xd00] sm:$0xff]
        %v674 = vld [vmem:[%s215 + $0xd08] sm:$0xff]
        %v675 = vld [vmem:[%s215 + $0xd10] sm:$0xff]
        %v676 = vld [vmem:[%s215 + $0xd18] sm:$0xff]
        %v677 = vld [vmem:[%s215 + $0xd20] sm:$0xff]
        %v678 = vld [vmem:[%s215 + $0xd28] sm:$0xff]
        %v679 = vld [vmem:[%s215 + $0xd30] sm:$0xff]
        %v680 = vld [vmem:[%s215 + $0xd38] sm:$0xff]
        %v681 = vld [vmem:[%s215 + $0xd40] sm:$0xff]
        %v682 = vld [vmem:[%s215 + $0xd48] sm:$0xff]
        %v683 = vld [vmem:[%s215 + $0xd50] sm:$0xff]
        %v684 = vld [vmem:[%s215 + $0xd58] sm:$0xff]
        %v685 = vld [vmem:[%s215 + $0xd60] sm:$0xff]
        %v686 = vld [vmem:[%s215 + $0xd68] sm:$0xff]
        %v687 = vld [vmem:[%s215 + $0xd70] sm:$0xff]
        %v688 = vld [vmem:[%s215 + $0xd78] sm:$0xff]
        %v689 = vld [vmem:[%s215 + $0xd80] sm:$0xff]
        %v690 = vld [vmem:[%s215 + $0xd88] sm:$0xff]
        %v691 = vld [vmem:[%s215 + $0xd90] sm:$0xff]
        %v692 = vld [vmem:[%s215 + $0xd98] sm:$0xff]
        %v693 = vld [vmem:[%s215 + $0xda0] sm:$0xff]
        %v694 = vld [vmem:[%s215 + $0xda8] sm:$0xff]
        %v695 = vld [vmem:[%s215 + $0xdb0] sm:$0xff]
        %v696 = vld [vmem:[%s215 + $0xdb8] sm:$0xff]
        %v697 = vld [vmem:[%s215 + $0xdc0] sm:$0xff]
        %v698 = vld [vmem:[%s215 + $0xdc8] sm:$0xff]
        %v699 = vld [vmem:[%s215 + $0xdd0] sm:$0xff]
        %v700 = vld [vmem:[%s215 + $0xdd8] sm:$0xff]
        %v701 = vld [vmem:[%s215 + $0xde0] sm:$0xff]
        %v702 = vld [vmem:[%s215 + $0xde8] sm:$0xff]
        %v703 = vld [vmem:[%s215 + $0xdf0] sm:$0xff]
        %v704 = vld [vmem:[%s215 + $0xdf8] sm:$0xff]
        %v705 = vld [vmem:[%s215 + $0xe00] sm:$0xff]
        %v706 = vld [vmem:[%s215 + $0xe08] sm:$0xff]
        %v707 = vld [vmem:[%s215 + $0xe10] sm:$0xff]
        %v708 = vld [vmem:[%s215 + $0xe18] sm:$0xff]
        %v709 = vld [vmem:[%s215 + $0xe20] sm:$0xff]
        %v710 = vld [vmem:[%s215 + $0xe28] sm:$0xff]
        %v711 = vld [vmem:[%s215 + $0xe30] sm:$0xff]
        %v712 = vld [vmem:[%s215 + $0xe38] sm:$0xff]
        %v713 = vld [vmem:[%s215 + $0xe40] sm:$0xff]
        %v714 = vld [vmem:[%s215 + $0xe48] sm:$0xff]
        %v715 = vld [vmem:[%s215 + $0xe50] sm:$0xff]
        %v716 = vld [vmem:[%s215 + $0xe58] sm:$0xff]
        %v717 = vld [vmem:[%s215 + $0xe60] sm:$0xff]
        %v718 = vld [vmem:[%s215 + $0xe68] sm:$0xff]
        %v719 = vld [vmem:[%s215 + $0xe70] sm:$0xff]
        %v720 = vld [vmem:[%s215 + $0xe78] sm:$0xff]
        %v721 = vld [vmem:[%s215 + $0xe80] sm:$0xff]
        %v722 = vld [vmem:[%s215 + $0xe88] sm:$0xff]
        %v723 = vld [vmem:[%s215 + $0xe90] sm:$0xff]
        %v724 = vld [vmem:[%s215 + $0xe98] sm:$0xff]
        %v725 = vld [vmem:[%s215 + $0xea0] sm:$0xff]
        %v726 = vld [vmem:[%s215 + $0xea8] sm:$0xff]
        %v727 = vld [vmem:[%s215 + $0xeb0] sm:$0xff]
        %v728 = vld [vmem:[%s215 + $0xeb8] sm:$0xff]
        %v729 = vld [vmem:[%s215 + $0xec0] sm:$0xff]
        %v730 = vld [vmem:[%s215 + $0xec8] sm:$0xff]
        %v731 = vld [vmem:[%s215 + $0xed0] sm:$0xff]
        %v732 = vld [vmem:[%s215 + $0xed8] sm:$0xff]
        %v733 = vld [vmem:[%s215 + $0xee0] sm:$0xff]
        %v734 = vld [vmem:[%s215 + $0xee8] sm:$0xff]
        %v735 = vld [vmem:[%s215 + $0xef0] sm:$0xff]
        %v736 = vld [vmem:[%s215 + $0xef8] sm:$0xff]
        %v737 = vld [vmem:[%s215 + $0xf00] sm:$0xff]
        %v738 = vld [vmem:[%s215 + $0xf08] sm:$0xff]
        %v739 = vld [vmem:[%s215 + $0xf10] sm:$0xff]
        %v740 = vld [vmem:[%s215 + $0xf18] sm:$0xff]
        %v741 = vld [vmem:[%s215 + $0xf20] sm:$0xff]
        %v742 = vld [vmem:[%s215 + $0xf28] sm:$0xff]
        %v743 = vld [vmem:[%s215 + $0xf30] sm:$0xff]
        %v744 = vld [vmem:[%s215 + $0xf38] sm:$0xff]
        %v745 = vld [vmem:[%s215 + $0xf40] sm:$0xff]
        %v746 = vld [vmem:[%s215 + $0xf48] sm:$0xff]
        %v747 = vld [vmem:[%s215 + $0xf50] sm:$0xff]
        %v748 = vld [vmem:[%s215 + $0xf58] sm:$0xff]
        %v749 = vld [vmem:[%s215 + $0xf60] sm:$0xff]
        %v750 = vld [vmem:[%s215 + $0xf68] sm:$0xff]
        %v751 = vld [vmem:[%s215 + $0xf70] sm:$0xff]
        %v752 = vld [vmem:[%s215 + $0xf78] sm:$0xff]
        %v753 = vld [vmem:[%s215 + $0xf80] sm:$0xff]
        %v754 = vld [vmem:[%s215 + $0xf88] sm:$0xff]
        %v755 = vld [vmem:[%s215 + $0xf90] sm:$0xff]
        %v756 = vld [vmem:[%s215 + $0xf98] sm:$0xff]
        %v757 = vld [vmem:[%s215 + $0xfa0] sm:$0xff]
        %v758 = vld [vmem:[%s215 + $0xfa8] sm:$0xff]
        %v759 = vld [vmem:[%s215 + $0xfb0] sm:$0xff]
        %v760 = vld [vmem:[%s215 + $0xfb8] sm:$0xff]
        %v761 = vld [vmem:[%s215 + $0xfc0] sm:$0xff]
        %v762 = vld [vmem:[%s215 + $0xfc8] sm:$0xff]
        %v763 = vld [vmem:[%s215 + $0xfd0] sm:$0xff]
        %v764 = vld [vmem:[%s215 + $0xfd8] sm:$0xff]
        %v765 = vld [vmem:[%s215 + $0xfe0] sm:$0xff]
        %v766 = vld [vmem:[%s215 + $0xfe8] sm:$0xff]
        %v767 = vld [vmem:[%s215 + $0xff0] sm:$0xff]
        %v768 = vld [vmem:[%s215 + $0xff8] sm:$0xff]
        %v769 = vld [vmem:[%s225] sm:$0xff]
        %v770 = vld [vmem:[%s225 + $0x8] sm:$0xff]
        %v771 = vld [vmem:[%s225 + $0x10] sm:$0xff]
        %v772 = vld [vmem:[%s225 + $0x18] sm:$0xff]
        %v773 = vld [vmem:[%s225 + $0x20] sm:$0xff]
        %v774 = vld [vmem:[%s225 + $0x28] sm:$0xff]
        %v775 = vld [vmem:[%s225 + $0x30] sm:$0xff]
        %v776 = vld [vmem:[%s225 + $0x38] sm:$0xff]
        %v777 = vld [vmem:[%s225 + $0x40] sm:$0xff]
        %v778 = vld [vmem:[%s225 + $0x48] sm:$0xff]
        %v779 = vld [vmem:[%s225 + $0x50] sm:$0xff]
        %v780 = vld [vmem:[%s225 + $0x58] sm:$0xff]
        %v781 = vld [vmem:[%s225 + $0x60] sm:$0xff]
        %v782 = vld [vmem:[%s225 + $0x68] sm:$0xff]
        %v783 = vld [vmem:[%s225 + $0x70] sm:$0xff]
        %v784 = vld [vmem:[%s225 + $0x78] sm:$0xff]
        %v785 = vld [vmem:[%s225 + $0x80] sm:$0xff]
        %v786 = vld [vmem:[%s225 + $0x88] sm:$0xff]
        %v787 = vld [vmem:[%s225 + $0x90] sm:$0xff]
        %v788 = vld [vmem:[%s225 + $0x98] sm:$0xff]
        %v789 = vld [vmem:[%s225 + $0xa0] sm:$0xff]
        %v790 = vld [vmem:[%s225 + $0xa8] sm:$0xff]
        %v791 = vld [vmem:[%s225 + $0xb0] sm:$0xff]
        %v792 = vld [vmem:[%s225 + $0xb8] sm:$0xff]
        %v793 = vld [vmem:[%s225 + $0xc0] sm:$0xff]
        %v794 = vld [vmem:[%s225 + $0xc8] sm:$0xff]
        %v795 = vld [vmem:[%s225 + $0xd0] sm:$0xff]
        %v796 = vld [vmem:[%s225 + $0xd8] sm:$0xff]
        %v797 = vld [vmem:[%s225 + $0xe0] sm:$0xff]
        %v798 = vld [vmem:[%s225 + $0xe8] sm:$0xff]
        %v799 = vld [vmem:[%s225 + $0xf0] sm:$0xff]
        %v800 = vld [vmem:[%s225 + $0xf8] sm:$0xff]
        %v801 = vld [vmem:[%s225 + $0x100] sm:$0xff]
        %v802 = vld [vmem:[%s225 + $0x108] sm:$0xff]
        %v803 = vld [vmem:[%s225 + $0x110] sm:$0xff]
        %v804 = vld [vmem:[%s225 + $0x118] sm:$0xff]
        %v805 = vld [vmem:[%s225 + $0x120] sm:$0xff]
        %v806 = vld [vmem:[%s225 + $0x128] sm:$0xff]
        %v807 = vld [vmem:[%s225 + $0x130] sm:$0xff]
        %v808 = vld [vmem:[%s225 + $0x138] sm:$0xff]
        %v809 = vld [vmem:[%s225 + $0x140] sm:$0xff]
        %v810 = vld [vmem:[%s225 + $0x148] sm:$0xff]
        %v811 = vld [vmem:[%s225 + $0x150] sm:$0xff]
        %v812 = vld [vmem:[%s225 + $0x158] sm:$0xff]
        %v813 = vld [vmem:[%s225 + $0x160] sm:$0xff]
        %v814 = vld [vmem:[%s225 + $0x168] sm:$0xff]
        %v815 = vld [vmem:[%s225 + $0x170] sm:$0xff]
        %v816 = vld [vmem:[%s225 + $0x178] sm:$0xff]
        %v817 = vld [vmem:[%s225 + $0x180] sm:$0xff]
        %v818 = vld [vmem:[%s225 + $0x188] sm:$0xff]
        %v819 = vld [vmem:[%s225 + $0x190] sm:$0xff]
        %v820 = vld [vmem:[%s225 + $0x198] sm:$0xff]
        %v821 = vld [vmem:[%s225 + $0x1a0] sm:$0xff]
        %v822 = vld [vmem:[%s225 + $0x1a8] sm:$0xff]
        %v823 = vld [vmem:[%s225 + $0x1b0] sm:$0xff]
        %v824 = vld [vmem:[%s225 + $0x1b8] sm:$0xff]
        %v825 = vld [vmem:[%s225 + $0x1c0] sm:$0xff]
        %v826 = vld [vmem:[%s225 + $0x1c8] sm:$0xff]
        %v827 = vld [vmem:[%s225 + $0x1d0] sm:$0xff]
        %v828 = vld [vmem:[%s225 + $0x1d8] sm:$0xff]
        %v829 = vld [vmem:[%s225 + $0x1e0] sm:$0xff]
        %v830 = vld [vmem:[%s225 + $0x1e8] sm:$0xff]
        %v831 = vld [vmem:[%s225 + $0x1f0] sm:$0xff]
        %v832 = vld [vmem:[%s225 + $0x1f8] sm:$0xff]
        %v833 = vld [vmem:[%s225 + $0x200] sm:$0xff]
        %v834 = vld [vmem:[%s225 + $0x208] sm:$0xff]
        %v835 = vld [vmem:[%s225 + $0x210] sm:$0xff]
        %v836 = vld [vmem:[%s225 + $0x218] sm:$0xff]
        %v837 = vld [vmem:[%s225 + $0x220] sm:$0xff]
        %v838 = vld [vmem:[%s225 + $0x228] sm:$0xff]
        %v839 = vld [vmem:[%s225 + $0x230] sm:$0xff]
        %v840 = vld [vmem:[%s225 + $0x238] sm:$0xff]
        %v841 = vld [vmem:[%s225 + $0x240] sm:$0xff]
        %v842 = vld [vmem:[%s225 + $0x248] sm:$0xff]
        %v843 = vld [vmem:[%s225 + $0x250] sm:$0xff]
        %v844 = vld [vmem:[%s225 + $0x258] sm:$0xff]
        %v845 = vld [vmem:[%s225 + $0x260] sm:$0xff]
        %v846 = vld [vmem:[%s225 + $0x268] sm:$0xff]
        %v847 = vld [vmem:[%s225 + $0x270] sm:$0xff]
        %v848 = vld [vmem:[%s225 + $0x278] sm:$0xff]
        %v849 = vld [vmem:[%s225 + $0x280] sm:$0xff]
        %v850 = vld [vmem:[%s225 + $0x288] sm:$0xff]
        %v851 = vld [vmem:[%s225 + $0x290] sm:$0xff]
        %v852 = vld [vmem:[%s225 + $0x298] sm:$0xff]
        %v853 = vld [vmem:[%s225 + $0x2a0] sm:$0xff]
        %v854 = vld [vmem:[%s225 + $0x2a8] sm:$0xff]
        %v855 = vld [vmem:[%s225 + $0x2b0] sm:$0xff]
        %v856 = vld [vmem:[%s225 + $0x2b8] sm:$0xff]
        %v857 = vld [vmem:[%s225 + $0x2c0] sm:$0xff]
        %v858 = vld [vmem:[%s225 + $0x2c8] sm:$0xff]
        %v859 = vld [vmem:[%s225 + $0x2d0] sm:$0xff]
        %v860 = vld [vmem:[%s225 + $0x2d8] sm:$0xff]
        %v861 = vld [vmem:[%s225 + $0x2e0] sm:$0xff]
        %v862 = vld [vmem:[%s225 + $0x2e8] sm:$0xff]
        %v863 = vld [vmem:[%s225 + $0x2f0] sm:$0xff]
        %v864 = vld [vmem:[%s225 + $0x2f8] sm:$0xff]
        %v865 = vld [vmem:[%s225 + $0x300] sm:$0xff]
        %v866 = vld [vmem:[%s225 + $0x308] sm:$0xff]
        %v867 = vld [vmem:[%s225 + $0x310] sm:$0xff]
        %v868 = vld [vmem:[%s225 + $0x318] sm:$0xff]
        %v869 = vld [vmem:[%s225 + $0x320] sm:$0xff]
        %v870 = vld [vmem:[%s225 + $0x328] sm:$0xff]
        %v871 = vld [vmem:[%s225 + $0x330] sm:$0xff]
        %v872 = vld [vmem:[%s225 + $0x338] sm:$0xff]
        %v873 = vld [vmem:[%s225 + $0x340] sm:$0xff]
        %v874 = vld [vmem:[%s225 + $0x348] sm:$0xff]
        %v875 = vld [vmem:[%s225 + $0x350] sm:$0xff]
        %v876 = vld [vmem:[%s225 + $0x358] sm:$0xff]
        %v877 = vld [vmem:[%s225 + $0x360] sm:$0xff]
        %v878 = vld [vmem:[%s225 + $0x368] sm:$0xff]
        %v879 = vld [vmem:[%s225 + $0x370] sm:$0xff]
        %v880 = vld [vmem:[%s225 + $0x378] sm:$0xff]
        %v881 = vld [vmem:[%s225 + $0x380] sm:$0xff]
        %v882 = vld [vmem:[%s225 + $0x388] sm:$0xff]
        %v883 = vld [vmem:[%s225 + $0x390] sm:$0xff]
        %v884 = vld [vmem:[%s225 + $0x398] sm:$0xff]
        %v885 = vld [vmem:[%s225 + $0x3a0] sm:$0xff]
        %v886 = vld [vmem:[%s225 + $0x3a8] sm:$0xff]
        %v887 = vld [vmem:[%s225 + $0x3b0] sm:$0xff]
        %v888 = vld [vmem:[%s225 + $0x3b8] sm:$0xff]
        %v889 = vld [vmem:[%s225 + $0x3c0] sm:$0xff]
        %v890 = vld [vmem:[%s225 + $0x3c8] sm:$0xff]
        %v891 = vld [vmem:[%s225 + $0x3d0] sm:$0xff]
        %v892 = vld [vmem:[%s225 + $0x3d8] sm:$0xff]
        %v893 = vld [vmem:[%s225 + $0x3e0] sm:$0xff]
        %v894 = vld [vmem:[%s225 + $0x3e8] sm:$0xff]
        %v895 = vld [vmem:[%s225 + $0x3f0] sm:$0xff]
        %v896 = vld [vmem:[%s225 + $0x3f8] sm:$0xff]
        %v897 = vld [vmem:[%s225 + $0x400] sm:$0xff]
        %v898 = vld [vmem:[%s225 + $0x408] sm:$0xff]
        %v899 = vld [vmem:[%s225 + $0x410] sm:$0xff]
        %v900 = vld [vmem:[%s225 + $0x418] sm:$0xff]
        %v901 = vld [vmem:[%s225 + $0x420] sm:$0xff]
        %v902 = vld [vmem:[%s225 + $0x428] sm:$0xff]
        %v903 = vld [vmem:[%s225 + $0x430] sm:$0xff]
        %v904 = vld [vmem:[%s225 + $0x438] sm:$0xff]
        %v905 = vld [vmem:[%s225 + $0x440] sm:$0xff]
        %v906 = vld [vmem:[%s225 + $0x448] sm:$0xff]
        %v907 = vld [vmem:[%s225 + $0x450] sm:$0xff]
        %v908 = vld [vmem:[%s225 + $0x458] sm:$0xff]
        %v909 = vld [vmem:[%s225 + $0x460] sm:$0xff]
        %v910 = vld [vmem:[%s225 + $0x468] sm:$0xff]
        %v911 = vld [vmem:[%s225 + $0x470] sm:$0xff]
        %v912 = vld [vmem:[%s225 + $0x478] sm:$0xff]
        %v913 = vld [vmem:[%s225 + $0x480] sm:$0xff]
        %v914 = vld [vmem:[%s225 + $0x488] sm:$0xff]
        %v915 = vld [vmem:[%s225 + $0x490] sm:$0xff]
        %v916 = vld [vmem:[%s225 + $0x498] sm:$0xff]
        %v917 = vld [vmem:[%s225 + $0x4a0] sm:$0xff]
        %v918 = vld [vmem:[%s225 + $0x4a8] sm:$0xff]
        %v919 = vld [vmem:[%s225 + $0x4b0] sm:$0xff]
        %v920 = vld [vmem:[%s225 + $0x4b8] sm:$0xff]
        %v921 = vld [vmem:[%s225 + $0x4c0] sm:$0xff]
        %v922 = vld [vmem:[%s225 + $0x4c8] sm:$0xff]
        %v923 = vld [vmem:[%s225 + $0x4d0] sm:$0xff]
        %v924 = vld [vmem:[%s225 + $0x4d8] sm:$0xff]
        %v925 = vld [vmem:[%s225 + $0x4e0] sm:$0xff]
        %v926 = vld [vmem:[%s225 + $0x4e8] sm:$0xff]
        %v927 = vld [vmem:[%s225 + $0x4f0] sm:$0xff]
        %v928 = vld [vmem:[%s225 + $0x4f8] sm:$0xff]
        %v929 = vld [vmem:[%s225 + $0x500] sm:$0xff]
        %v930 = vld [vmem:[%s225 + $0x508] sm:$0xff]
        %v931 = vld [vmem:[%s225 + $0x510] sm:$0xff]
        %v932 = vld [vmem:[%s225 + $0x518] sm:$0xff]
        %v933 = vld [vmem:[%s225 + $0x520] sm:$0xff]
        %v934 = vld [vmem:[%s225 + $0x528] sm:$0xff]
        %v935 = vld [vmem:[%s225 + $0x530] sm:$0xff]
        %v936 = vld [vmem:[%s225 + $0x538] sm:$0xff]
        %v937 = vld [vmem:[%s225 + $0x540] sm:$0xff]
        %v938 = vld [vmem:[%s225 + $0x548] sm:$0xff]
        %v939 = vld [vmem:[%s225 + $0x550] sm:$0xff]
        %v940 = vld [vmem:[%s225 + $0x558] sm:$0xff]
        %v941 = vld [vmem:[%s225 + $0x560] sm:$0xff]
        %v942 = vld [vmem:[%s225 + $0x568] sm:$0xff]
        %v943 = vld [vmem:[%s225 + $0x570] sm:$0xff]
        %v944 = vld [vmem:[%s225 + $0x578] sm:$0xff]
        %v945 = vld [vmem:[%s225 + $0x580] sm:$0xff]
        %v946 = vld [vmem:[%s225 + $0x588] sm:$0xff]
        %v947 = vld [vmem:[%s225 + $0x590] sm:$0xff]
        %v948 = vld [vmem:[%s225 + $0x598] sm:$0xff]
        %v949 = vld [vmem:[%s225 + $0x5a0] sm:$0xff]
        %v950 = vld [vmem:[%s225 + $0x5a8] sm:$0xff]
        %v951 = vld [vmem:[%s225 + $0x5b0] sm:$0xff]
        %v952 = vld [vmem:[%s225 + $0x5b8] sm:$0xff]
        %v953 = vld [vmem:[%s225 + $0x5c0] sm:$0xff]
        %v954 = vld [vmem:[%s225 + $0x5c8] sm:$0xff]
        %v955 = vld [vmem:[%s225 + $0x5d0] sm:$0xff]
        %v956 = vld [vmem:[%s225 + $0x5d8] sm:$0xff]
        %v957 = vld [vmem:[%s225 + $0x5e0] sm:$0xff]
        %v958 = vld [vmem:[%s225 + $0x5e8] sm:$0xff]
        %v959 = vld [vmem:[%s225 + $0x5f0] sm:$0xff]
        %v960 = vld [vmem:[%s225 + $0x5f8] sm:$0xff]
        %v961 = vld [vmem:[%s225 + $0x600] sm:$0xff]
        %v962 = vld [vmem:[%s225 + $0x608] sm:$0xff]
        %v963 = vld [vmem:[%s225 + $0x610] sm:$0xff]
        %v964 = vld [vmem:[%s225 + $0x618] sm:$0xff]
        %v965 = vld [vmem:[%s225 + $0x620] sm:$0xff]
        %v966 = vld [vmem:[%s225 + $0x628] sm:$0xff]
        %v967 = vld [vmem:[%s225 + $0x630] sm:$0xff]
        %v968 = vld [vmem:[%s225 + $0x638] sm:$0xff]
        %v969 = vld [vmem:[%s225 + $0x640] sm:$0xff]
        %v970 = vld [vmem:[%s225 + $0x648] sm:$0xff]
        %v971 = vld [vmem:[%s225 + $0x650] sm:$0xff]
        %v972 = vld [vmem:[%s225 + $0x658] sm:$0xff]
        %v973 = vld [vmem:[%s225 + $0x660] sm:$0xff]
        %v974 = vld [vmem:[%s225 + $0x668] sm:$0xff]
        %v975 = vld [vmem:[%s225 + $0x670] sm:$0xff]
        %v976 = vld [vmem:[%s225 + $0x678] sm:$0xff]
        %v977 = vld [vmem:[%s225 + $0x680] sm:$0xff]
        %v978 = vld [vmem:[%s225 + $0x688] sm:$0xff]
        %v979 = vld [vmem:[%s225 + $0x690] sm:$0xff]
        %v980 = vld [vmem:[%s225 + $0x698] sm:$0xff]
        %v981 = vld [vmem:[%s225 + $0x6a0] sm:$0xff]
        %v982 = vld [vmem:[%s225 + $0x6a8] sm:$0xff]
        %v983 = vld [vmem:[%s225 + $0x6b0] sm:$0xff]
        %v984 = vld [vmem:[%s225 + $0x6b8] sm:$0xff]
        %v985 = vld [vmem:[%s225 + $0x6c0] sm:$0xff]
        %v986 = vld [vmem:[%s225 + $0x6c8] sm:$0xff]
        %v987 = vld [vmem:[%s225 + $0x6d0] sm:$0xff]
        %v988 = vld [vmem:[%s225 + $0x6d8] sm:$0xff]
        %v989 = vld [vmem:[%s225 + $0x6e0] sm:$0xff]
        %v990 = vld [vmem:[%s225 + $0x6e8] sm:$0xff]
        %v991 = vld [vmem:[%s225 + $0x6f0] sm:$0xff]
        %v992 = vld [vmem:[%s225 + $0x6f8] sm:$0xff]
        %v993 = vld [vmem:[%s225 + $0x700] sm:$0xff]
        %v994 = vld [vmem:[%s225 + $0x708] sm:$0xff]
        %v995 = vld [vmem:[%s225 + $0x710] sm:$0xff]
        %v996 = vld [vmem:[%s225 + $0x718] sm:$0xff]
        %v997 = vld [vmem:[%s225 + $0x720] sm:$0xff]
        %v998 = vld [vmem:[%s225 + $0x728] sm:$0xff]
        %v999 = vld [vmem:[%s225 + $0x730] sm:$0xff]
        %v1000 = vld [vmem:[%s225 + $0x738] sm:$0xff]
        %v1001 = vld [vmem:[%s225 + $0x740] sm:$0xff]
        %v1002 = vld [vmem:[%s225 + $0x748] sm:$0xff]
        %v1003 = vld [vmem:[%s225 + $0x750] sm:$0xff]
        %v1004 = vld [vmem:[%s225 + $0x758] sm:$0xff]
        %v1005 = vld [vmem:[%s225 + $0x760] sm:$0xff]
        %v1006 = vld [vmem:[%s225 + $0x768] sm:$0xff]
        %v1007 = vld [vmem:[%s225 + $0x770] sm:$0xff]
        %v1008 = vld [vmem:[%s225 + $0x778] sm:$0xff]
        %v1009 = vld [vmem:[%s225 + $0x780] sm:$0xff]
        %v1010 = vld [vmem:[%s225 + $0x788] sm:$0xff]
        %v1011 = vld [vmem:[%s225 + $0x790] sm:$0xff]
        %v1012 = vld [vmem:[%s225 + $0x798] sm:$0xff]
        %v1013 = vld [vmem:[%s225 + $0x7a0] sm:$0xff]
        %v1014 = vld [vmem:[%s225 + $0x7a8] sm:$0xff]
        %v1015 = vld [vmem:[%s225 + $0x7b0] sm:$0xff]
        %v1016 = vld [vmem:[%s225 + $0x7b8] sm:$0xff]
        %v1017 = vld [vmem:[%s225 + $0x7c0] sm:$0xff]
        %v1018 = vld [vmem:[%s225 + $0x7c8] sm:$0xff]
        %v1019 = vld [vmem:[%s225 + $0x7d0] sm:$0xff]
        %v1020 = vld [vmem:[%s225 + $0x7d8] sm:$0xff]
        %v1021 = vld [vmem:[%s225 + $0x7e0] sm:$0xff]
        %v1022 = vld [vmem:[%s225 + $0x7e8] sm:$0xff]
        %v1023 = vld [vmem:[%s225 + $0x7f0] sm:$0xff]
        %v1024 = vld [vmem:[%s225 + $0x7f8] sm:$0xff]
        %v1025 = vadd.f32 %v257, %v769
        %v1026 = vadd.f32 %v258, %v770
        %v1027 = vadd.f32 %v259, %v771
        %v1028 = vadd.f32 %v260, %v772
        %v1029 = vadd.f32 %v261, %v773
        %v1030 = vadd.f32 %v262, %v774
        %v1031 = vadd.f32 %v263, %v775
        %v1032 = vadd.f32 %v264, %v776
        %v1033 = vadd.f32 %v265, %v777
        %v1034 = vadd.f32 %v266, %v778
        %v1035 = vadd.f32 %v267, %v779
        %v1036 = vadd.f32 %v268, %v780
        %v1037 = vadd.f32 %v269, %v781
        %v1038 = vadd.f32 %v270, %v782
        %v1039 = vadd.f32 %v271, %v783
        %v1040 = vadd.f32 %v272, %v784
        %v1041 = vadd.f32 %v273, %v785
        %v1042 = vadd.f32 %v274, %v786
        %v1043 = vadd.f32 %v275, %v787
        %v1044 = vadd.f32 %v276, %v788
        %v1045 = vadd.f32 %v277, %v789
        %v1046 = vadd.f32 %v278, %v790
        %v1047 = vadd.f32 %v279, %v791
        %v1048 = vadd.f32 %v280, %v792
        %v1049 = vadd.f32 %v281, %v793
        %v1050 = vadd.f32 %v282, %v794
        %v1051 = vadd.f32 %v283, %v795
        %v1052 = vadd.f32 %v284, %v796
        %v1053 = vadd.f32 %v285, %v797
        %v1054 = vadd.f32 %v286, %v798
        %v1055 = vadd.f32 %v287, %v799
        %v1056 = vadd.f32 %v288, %v800
        %v1057 = vadd.f32 %v289, %v801
        %v1058 = vadd.f32 %v290, %v802
        %v1059 = vadd.f32 %v291, %v803
        %v1060 = vadd.f32 %v292, %v804
        %v1061 = vadd.f32 %v293, %v805
        %v1062 = vadd.f32 %v294, %v806
        %v1063 = vadd.f32 %v295, %v807
        %v1064 = vadd.f32 %v296, %v808
        %v1065 = vadd.f32 %v297, %v809
        %v1066 = vadd.f32 %v298, %v810
        %v1067 = vadd.f32 %v299, %v811
        %v1068 = vadd.f32 %v300, %v812
        %v1069 = vadd.f32 %v301, %v813
        %v1070 = vadd.f32 %v302, %v814
        %v1071 = vadd.f32 %v303, %v815
        %v1072 = vadd.f32 %v304, %v816
        %v1073 = vadd.f32 %v305, %v817
        %v1074 = vadd.f32 %v306, %v818
        %v1075 = vadd.f32 %v307, %v819
        %v1076 = vadd.f32 %v308, %v820
        %v1077 = vadd.f32 %v309, %v821
        %v1078 = vadd.f32 %v310, %v822
        %v1079 = vadd.f32 %v311, %v823
        %v1080 = vadd.f32 %v312, %v824
        %v1081 = vadd.f32 %v313, %v825
        %v1082 = vadd.f32 %v314, %v826
        %v1083 = vadd.f32 %v315, %v827
        %v1084 = vadd.f32 %v316, %v828
        %v1085 = vadd.f32 %v317, %v829
        %v1086 = vadd.f32 %v318, %v830
        %v1087 = vadd.f32 %v319, %v831
        %v1088 = vadd.f32 %v320, %v832
        %v1089 = vadd.f32 %v321, %v833
        %v1090 = vadd.f32 %v322, %v834
        %v1091 = vadd.f32 %v323, %v835
        %v1092 = vadd.f32 %v324, %v836
        %v1093 = vadd.f32 %v325, %v837
        %v1094 = vadd.f32 %v326, %v838
        %v1095 = vadd.f32 %v327, %v839
        %v1096 = vadd.f32 %v328, %v840
        %v1097 = vadd.f32 %v329, %v841
        %v1098 = vadd.f32 %v330, %v842
        %v1099 = vadd.f32 %v331, %v843
        %v1100 = vadd.f32 %v332, %v844
        %v1101 = vadd.f32 %v333, %v845
        %v1102 = vadd.f32 %v334, %v846
        %v1103 = vadd.f32 %v335, %v847
        %v1104 = vadd.f32 %v336, %v848
        %v1105 = vadd.f32 %v337, %v849
        %v1106 = vadd.f32 %v338, %v850
        %v1107 = vadd.f32 %v339, %v851
        %v1108 = vadd.f32 %v340, %v852
        %v1109 = vadd.f32 %v341, %v853
        %v1110 = vadd.f32 %v342, %v854
        %v1111 = vadd.f32 %v343, %v855
        %v1112 = vadd.f32 %v344, %v856
        %v1113 = vadd.f32 %v345, %v857
        %v1114 = vadd.f32 %v346, %v858
        %v1115 = vadd.f32 %v347, %v859
        %v1116 = vadd.f32 %v348, %v860
        %v1117 = vadd.f32 %v349, %v861
        %v1118 = vadd.f32 %v350, %v862
        %v1119 = vadd.f32 %v351, %v863
        %v1120 = vadd.f32 %v352, %v864
        %v1121 = vadd.f32 %v353, %v865
        %v1122 = vadd.f32 %v354, %v866
        %v1123 = vadd.f32 %v355, %v867
        %v1124 = vadd.f32 %v356, %v868
        %v1125 = vadd.f32 %v357, %v869
        %v1126 = vadd.f32 %v358, %v870
        %v1127 = vadd.f32 %v359, %v871
        %v1128 = vadd.f32 %v360, %v872
        %v1129 = vadd.f32 %v361, %v873
        %v1130 = vadd.f32 %v362, %v874
        %v1131 = vadd.f32 %v363, %v875
        %v1132 = vadd.f32 %v364, %v876
        %v1133 = vadd.f32 %v365, %v877
        %v1134 = vadd.f32 %v366, %v878
        %v1135 = vadd.f32 %v367, %v879
        %v1136 = vadd.f32 %v368, %v880
        %v1137 = vadd.f32 %v369, %v881
        %v1138 = vadd.f32 %v370, %v882
        %v1139 = vadd.f32 %v371, %v883
        %v1140 = vadd.f32 %v372, %v884
        %v1141 = vadd.f32 %v373, %v885
        %v1142 = vadd.f32 %v374, %v886
        %v1143 = vadd.f32 %v375, %v887
        %v1144 = vadd.f32 %v376, %v888
        %v1145 = vadd.f32 %v377, %v889
        %v1146 = vadd.f32 %v378, %v890
        %v1147 = vadd.f32 %v379, %v891
        %v1148 = vadd.f32 %v380, %v892
        %v1149 = vadd.f32 %v381, %v893
        %v1150 = vadd.f32 %v382, %v894
        %v1151 = vadd.f32 %v383, %v895
        %v1152 = vadd.f32 %v384, %v896
        %v1153 = vadd.f32 %v385, %v897
        %v1154 = vadd.f32 %v386, %v898
        %v1155 = vadd.f32 %v387, %v899
        %v1156 = vadd.f32 %v388, %v900
        %v1157 = vadd.f32 %v389, %v901
        %v1158 = vadd.f32 %v390, %v902
        %v1159 = vadd.f32 %v391, %v903
        %v1160 = vadd.f32 %v392, %v904
        %v1161 = vadd.f32 %v393, %v905
        %v1162 = vadd.f32 %v394, %v906
        %v1163 = vadd.f32 %v395, %v907
        %v1164 = vadd.f32 %v396, %v908
        %v1165 = vadd.f32 %v397, %v909
        %v1166 = vadd.f32 %v398, %v910
        %v1167 = vadd.f32 %v399, %v911
        %v1168 = vadd.f32 %v400, %v912
        %v1169 = vadd.f32 %v401, %v913
        %v1170 = vadd.f32 %v402, %v914
        %v1171 = vadd.f32 %v403, %v915
        %v1172 = vadd.f32 %v404, %v916
        %v1173 = vadd.f32 %v405, %v917
        %v1174 = vadd.f32 %v406, %v918
        %v1175 = vadd.f32 %v407, %v919
        %v1176 = vadd.f32 %v408, %v920
        %v1177 = vadd.f32 %v409, %v921
        %v1178 = vadd.f32 %v410, %v922
        %v1179 = vadd.f32 %v411, %v923
        %v1180 = vadd.f32 %v412, %v924
        %v1181 = vadd.f32 %v413, %v925
        %v1182 = vadd.f32 %v414, %v926
        %v1183 = vadd.f32 %v415, %v927
        %v1184 = vadd.f32 %v416, %v928
        %v1185 = vadd.f32 %v417, %v929
        %v1186 = vadd.f32 %v418, %v930
        %v1187 = vadd.f32 %v419, %v931
        %v1188 = vadd.f32 %v420, %v932
        %v1189 = vadd.f32 %v421, %v933
        %v1190 = vadd.f32 %v422, %v934
        %v1191 = vadd.f32 %v423, %v935
        %v1192 = vadd.f32 %v424, %v936
        %v1193 = vadd.f32 %v425, %v937
        %v1194 = vadd.f32 %v426, %v938
        %v1195 = vadd.f32 %v427, %v939
        %v1196 = vadd.f32 %v428, %v940
        %v1197 = vadd.f32 %v429, %v941
        %v1198 = vadd.f32 %v430, %v942
        %v1199 = vadd.f32 %v431, %v943
        %v1200 = vadd.f32 %v432, %v944
        %v1201 = vadd.f32 %v433, %v945
        %v1202 = vadd.f32 %v434, %v946
        %v1203 = vadd.f32 %v435, %v947
        %v1204 = vadd.f32 %v436, %v948
        %v1205 = vadd.f32 %v437, %v949
        %v1206 = vadd.f32 %v438, %v950
        %v1207 = vadd.f32 %v439, %v951
        %v1208 = vadd.f32 %v440, %v952
        %v1209 = vadd.f32 %v441, %v953
        %v1210 = vadd.f32 %v442, %v954
        %v1211 = vadd.f32 %v443, %v955
        %v1212 = vadd.f32 %v444, %v956
        %v1213 = vadd.f32 %v445, %v957
        %v1214 = vadd.f32 %v446, %v958
        %v1215 = vadd.f32 %v447, %v959
        %v1216 = vadd.f32 %v448, %v960
        %v1217 = vadd.f32 %v449, %v961
        %v1218 = vadd.f32 %v450, %v962
        %v1219 = vadd.f32 %v451, %v963
        %v1220 = vadd.f32 %v452, %v964
        %v1221 = vadd.f32 %v453, %v965
        %v1222 = vadd.f32 %v454, %v966
        %v1223 = vadd.f32 %v455, %v967
        %v1224 = vadd.f32 %v456, %v968
        %v1225 = vadd.f32 %v457, %v969
        %v1226 = vadd.f32 %v458, %v970
        %v1227 = vadd.f32 %v459, %v971
        %v1228 = vadd.f32 %v460, %v972
        %v1229 = vadd.f32 %v461, %v973
        %v1230 = vadd.f32 %v462, %v974
        %v1231 = vadd.f32 %v463, %v975
        %v1232 = vadd.f32 %v464, %v976
        %v1233 = vadd.f32 %v465, %v977
        %v1234 = vadd.f32 %v466, %v978
        %v1235 = vadd.f32 %v467, %v979
        %v1236 = vadd.f32 %v468, %v980
        %v1237 = vadd.f32 %v469, %v981
        %v1238 = vadd.f32 %v470, %v982
        %v1239 = vadd.f32 %v471, %v983
        %v1240 = vadd.f32 %v472, %v984
        %v1241 = vadd.f32 %v473, %v985
        %v1242 = vadd.f32 %v474, %v986
        %v1243 = vadd.f32 %v475, %v987
        %v1244 = vadd.f32 %v476, %v988
        %v1245 = vadd.f32 %v477, %v989
        %v1246 = vadd.f32 %v478, %v990
        %v1247 = vadd.f32 %v479, %v991
        %v1248 = vadd.f32 %v480, %v992
        %v1249 = vadd.f32 %v481, %v993
        %v1250 = vadd.f32 %v482, %v994
        %v1251 = vadd.f32 %v483, %v995
        %v1252 = vadd.f32 %v484, %v996
        %v1253 = vadd.f32 %v485, %v997
        %v1254 = vadd.f32 %v486, %v998
        %v1255 = vadd.f32 %v487, %v999
        %v1256 = vadd.f32 %v488, %v1000
        %v1257 = vadd.f32 %v489, %v1001
        %v1258 = vadd.f32 %v490, %v1002
        %v1259 = vadd.f32 %v491, %v1003
        %v1260 = vadd.f32 %v492, %v1004
        %v1261 = vadd.f32 %v493, %v1005
        %v1262 = vadd.f32 %v494, %v1006
        %v1263 = vadd.f32 %v495, %v1007
        %v1264 = vadd.f32 %v496, %v1008
        %v1265 = vadd.f32 %v497, %v1009
        %v1266 = vadd.f32 %v498, %v1010
        %v1267 = vadd.f32 %v499, %v1011
        %v1268 = vadd.f32 %v500, %v1012
        %v1269 = vadd.f32 %v501, %v1013
        %v1270 = vadd.f32 %v502, %v1014
        %v1271 = vadd.f32 %v503, %v1015
        %v1272 = vadd.f32 %v504, %v1016
        %v1273 = vadd.f32 %v505, %v1017
        %v1274 = vadd.f32 %v506, %v1018
        %v1275 = vadd.f32 %v507, %v1019
        %v1276 = vadd.f32 %v508, %v1020
        %v1277 = vadd.f32 %v509, %v1021
        %v1278 = vadd.f32 %v510, %v1022
        %v1279 = vadd.f32 %v511, %v1023
        %v1280 = vadd.f32 %v512, %v1024
        %v1281 = vadd.f32 %v513, %v769
        %v1282 = vadd.f32 %v514, %v770
        %v1283 = vadd.f32 %v515, %v771
        %v1284 = vadd.f32 %v516, %v772
        %v1285 = vadd.f32 %v517, %v773
        %v1286 = vadd.f32 %v518, %v774
        %v1287 = vadd.f32 %v519, %v775
        %v1288 = vadd.f32 %v520, %v776
        %v1289 = vadd.f32 %v521, %v777
        %v1290 = vadd.f32 %v522, %v778
        %v1291 = vadd.f32 %v523, %v779
        %v1292 = vadd.f32 %v524, %v780
        %v1293 = vadd.f32 %v525, %v781
        %v1294 = vadd.f32 %v526, %v782
        %v1295 = vadd.f32 %v527, %v783
        %v1296 = vadd.f32 %v528, %v784
        %v1297 = vadd.f32 %v529, %v785
        %v1298 = vadd.f32 %v530, %v786
        %v1299 = vadd.f32 %v531, %v787
        %v1300 = vadd.f32 %v532, %v788
        %v1301 = vadd.f32 %v533, %v789
        %v1302 = vadd.f32 %v534, %v790
        %v1303 = vadd.f32 %v535, %v791
        %v1304 = vadd.f32 %v536, %v792
        %v1305 = vadd.f32 %v537, %v793
        %v1306 = vadd.f32 %v538, %v794
        %v1307 = vadd.f32 %v539, %v795
        %v1308 = vadd.f32 %v540, %v796
        %v1309 = vadd.f32 %v541, %v797
        %v1310 = vadd.f32 %v542, %v798
        %v1311 = vadd.f32 %v543, %v799
        %v1312 = vadd.f32 %v544, %v800
        %v1313 = vadd.f32 %v545, %v801
        %v1314 = vadd.f32 %v546, %v802
        %v1315 = vadd.f32 %v547, %v803
        %v1316 = vadd.f32 %v548, %v804
        %v1317 = vadd.f32 %v549, %v805
        %v1318 = vadd.f32 %v550, %v806
        %v1319 = vadd.f32 %v551, %v807
        %v1320 = vadd.f32 %v552, %v808
        %v1321 = vadd.f32 %v553, %v809
        %v1322 = vadd.f32 %v554, %v810
        %v1323 = vadd.f32 %v555, %v811
        %v1324 = vadd.f32 %v556, %v812
        %v1325 = vadd.f32 %v557, %v813
        %v1326 = vadd.f32 %v558, %v814
        %v1327 = vadd.f32 %v559, %v815
        %v1328 = vadd.f32 %v560, %v816
        %v1329 = vadd.f32 %v561, %v817
        %v1330 = vadd.f32 %v562, %v818
        %v1331 = vadd.f32 %v563, %v819
        %v1332 = vadd.f32 %v564, %v820
        %v1333 = vadd.f32 %v565, %v821
        %v1334 = vadd.f32 %v566, %v822
        %v1335 = vadd.f32 %v567, %v823
        %v1336 = vadd.f32 %v568, %v824
        %v1337 = vadd.f32 %v569, %v825
        %v1338 = vadd.f32 %v570, %v826
        %v1339 = vadd.f32 %v571, %v827
        %v1340 = vadd.f32 %v572, %v828
        %v1341 = vadd.f32 %v573, %v829
        %v1342 = vadd.f32 %v574, %v830
        %v1343 = vadd.f32 %v575, %v831
        %v1344 = vadd.f32 %v576, %v832
        %v1345 = vadd.f32 %v577, %v833
        %v1346 = vadd.f32 %v578, %v834
        %v1347 = vadd.f32 %v579, %v835
        %v1348 = vadd.f32 %v580, %v836
        %v1349 = vadd.f32 %v581, %v837
        %v1350 = vadd.f32 %v582, %v838
        %v1351 = vadd.f32 %v583, %v839
        %v1352 = vadd.f32 %v584, %v840
        %v1353 = vadd.f32 %v585, %v841
        %v1354 = vadd.f32 %v586, %v842
        %v1355 = vadd.f32 %v587, %v843
        %v1356 = vadd.f32 %v588, %v844
        %v1357 = vadd.f32 %v589, %v845
        %v1358 = vadd.f32 %v590, %v846
        %v1359 = vadd.f32 %v591, %v847
        %v1360 = vadd.f32 %v592, %v848
        %v1361 = vadd.f32 %v593, %v849
        %v1362 = vadd.f32 %v594, %v850
        %v1363 = vadd.f32 %v595, %v851
        %v1364 = vadd.f32 %v596, %v852
        %v1365 = vadd.f32 %v597, %v853
        %v1366 = vadd.f32 %v598, %v854
        %v1367 = vadd.f32 %v599, %v855
        %v1368 = vadd.f32 %v600, %v856
        %v1369 = vadd.f32 %v601, %v857
        %v1370 = vadd.f32 %v602, %v858
        %v1371 = vadd.f32 %v603, %v859
        %v1372 = vadd.f32 %v604, %v860
        %v1373 = vadd.f32 %v605, %v861
        %v1374 = vadd.f32 %v606, %v862
        %v1375 = vadd.f32 %v607, %v863
        %v1376 = vadd.f32 %v608, %v864
        %v1377 = vadd.f32 %v609, %v865
        %v1378 = vadd.f32 %v610, %v866
        %v1379 = vadd.f32 %v611, %v867
        %v1380 = vadd.f32 %v612, %v868
        %v1381 = vadd.f32 %v613, %v869
        %v1382 = vadd.f32 %v614, %v870
        %v1383 = vadd.f32 %v615, %v871
        %v1384 = vadd.f32 %v616, %v872
        %v1385 = vadd.f32 %v617, %v873
        %v1386 = vadd.f32 %v618, %v874
        %v1387 = vadd.f32 %v619, %v875
        %v1388 = vadd.f32 %v620, %v876
        %v1389 = vadd.f32 %v621, %v877
        %v1390 = vadd.f32 %v622, %v878
        %v1391 = vadd.f32 %v623, %v879
        %v1392 = vadd.f32 %v624, %v880
        %v1393 = vadd.f32 %v625, %v881
        %v1394 = vadd.f32 %v626, %v882
        %v1395 = vadd.f32 %v627, %v883
        %v1396 = vadd.f32 %v628, %v884
        %v1397 = vadd.f32 %v629, %v885
        %v1398 = vadd.f32 %v630, %v886
        %v1399 = vadd.f32 %v631, %v887
        %v1400 = vadd.f32 %v632, %v888
        %v1401 = vadd.f32 %v633, %v889
        %v1402 = vadd.f32 %v634, %v890
        %v1403 = vadd.f32 %v635, %v891
        %v1404 = vadd.f32 %v636, %v892
        %v1405 = vadd.f32 %v637, %v893
        %v1406 = vadd.f32 %v638, %v894
        %v1407 = vadd.f32 %v639, %v895
        %v1408 = vadd.f32 %v640, %v896
        %v1409 = vadd.f32 %v641, %v897
        %v1410 = vadd.f32 %v642, %v898
        %v1411 = vadd.f32 %v643, %v899
        %v1412 = vadd.f32 %v644, %v900
        %v1413 = vadd.f32 %v645, %v901
        %v1414 = vadd.f32 %v646, %v902
        %v1415 = vadd.f32 %v647, %v903
        %v1416 = vadd.f32 %v648, %v904
        %v1417 = vadd.f32 %v649, %v905
        %v1418 = vadd.f32 %v650, %v906
        %v1419 = vadd.f32 %v651, %v907
        %v1420 = vadd.f32 %v652, %v908
        %v1421 = vadd.f32 %v653, %v909
        %v1422 = vadd.f32 %v654, %v910
        %v1423 = vadd.f32 %v655, %v911
        %v1424 = vadd.f32 %v656, %v912
        %v1425 = vadd.f32 %v657, %v913
        %v1426 = vadd.f32 %v658, %v914
        %v1427 = vadd.f32 %v659, %v915
        %v1428 = vadd.f32 %v660, %v916
        %v1429 = vadd.f32 %v661, %v917
        %v1430 = vadd.f32 %v662, %v918
        %v1431 = vadd.f32 %v663, %v919
        %v1432 = vadd.f32 %v664, %v920
        %v1433 = vadd.f32 %v665, %v921
        %v1434 = vadd.f32 %v666, %v922
        %v1435 = vadd.f32 %v667, %v923
        %v1436 = vadd.f32 %v668, %v924
        %v1437 = vadd.f32 %v669, %v925
        %v1438 = vadd.f32 %v670, %v926
        %v1439 = vadd.f32 %v671, %v927
        %v1440 = vadd.f32 %v672, %v928
        %v1441 = vadd.f32 %v673, %v929
        %v1442 = vadd.f32 %v674, %v930
        %v1443 = vadd.f32 %v675, %v931
        %v1444 = vadd.f32 %v676, %v932
        %v1445 = vadd.f32 %v677, %v933
        %v1446 = vadd.f32 %v678, %v934
        %v1447 = vadd.f32 %v679, %v935
        %v1448 = vadd.f32 %v680, %v936
        %v1449 = vadd.f32 %v681, %v937
        %v1450 = vadd.f32 %v682, %v938
        %v1451 = vadd.f32 %v683, %v939
        %v1452 = vadd.f32 %v684, %v940
        %v1453 = vadd.f32 %v685, %v941
        %v1454 = vadd.f32 %v686, %v942
        %v1455 = vadd.f32 %v687, %v943
        %v1456 = vadd.f32 %v688, %v944
        %v1457 = vadd.f32 %v689, %v945
        %v1458 = vadd.f32 %v690, %v946
        %v1459 = vadd.f32 %v691, %v947
        %v1460 = vadd.f32 %v692, %v948
        %v1461 = vadd.f32 %v693, %v949
        %v1462 = vadd.f32 %v694, %v950
        %v1463 = vadd.f32 %v695, %v951
        %v1464 = vadd.f32 %v696, %v952
        %v1465 = vadd.f32 %v697, %v953
        %v1466 = vadd.f32 %v698, %v954
        %v1467 = vadd.f32 %v699, %v955
        %v1468 = vadd.f32 %v700, %v956
        %v1469 = vadd.f32 %v701, %v957
        %v1470 = vadd.f32 %v702, %v958
        %v1471 = vadd.f32 %v703, %v959
        %v1472 = vadd.f32 %v704, %v960
        %v1473 = vadd.f32 %v705, %v961
        %v1474 = vadd.f32 %v706, %v962
        %v1475 = vadd.f32 %v707, %v963
        %v1476 = vadd.f32 %v708, %v964
        %v1477 = vadd.f32 %v709, %v965
        %v1478 = vadd.f32 %v710, %v966
        %v1479 = vadd.f32 %v711, %v967
        %v1480 = vadd.f32 %v712, %v968
        %v1481 = vadd.f32 %v713, %v969
        %v1482 = vadd.f32 %v714, %v970
        %v1483 = vadd.f32 %v715, %v971
        %v1484 = vadd.f32 %v716, %v972
        %v1485 = vadd.f32 %v717, %v973
        %v1486 = vadd.f32 %v718, %v974
        %v1487 = vadd.f32 %v719, %v975
        %v1488 = vadd.f32 %v720, %v976
        %v1489 = vadd.f32 %v721, %v977
        %v1490 = vadd.f32 %v722, %v978
        %v1491 = vadd.f32 %v723, %v979
        %v1492 = vadd.f32 %v724, %v980
        %v1493 = vadd.f32 %v725, %v981
        %v1494 = vadd.f32 %v726, %v982
        %v1495 = vadd.f32 %v727, %v983
        %v1496 = vadd.f32 %v728, %v984
        %v1497 = vadd.f32 %v729, %v985
        %v1498 = vadd.f32 %v730, %v986
        %v1499 = vadd.f32 %v731, %v987
        %v1500 = vadd.f32 %v732, %v988
        %v1501 = vadd.f32 %v733, %v989
        %v1502 = vadd.f32 %v734, %v990
        %v1503 = vadd.f32 %v735, %v991
        %v1504 = vadd.f32 %v736, %v992
        %v1505 = vadd.f32 %v737, %v993
        %v1506 = vadd.f32 %v738, %v994
        %v1507 = vadd.f32 %v739, %v995
        %v1508 = vadd.f32 %v740, %v996
        %v1509 = vadd.f32 %v741, %v997
        %v1510 = vadd.f32 %v742, %v998
        %v1511 = vadd.f32 %v743, %v999
        %v1512 = vadd.f32 %v744, %v1000
        %v1513 = vadd.f32 %v745, %v1001
        %v1514 = vadd.f32 %v746, %v1002
        %v1515 = vadd.f32 %v747, %v1003
        %v1516 = vadd.f32 %v748, %v1004
        %v1517 = vadd.f32 %v749, %v1005
        %v1518 = vadd.f32 %v750, %v1006
        %v1519 = vadd.f32 %v751, %v1007
        %v1520 = vadd.f32 %v752, %v1008
        %v1521 = vadd.f32 %v753, %v1009
        %v1522 = vadd.f32 %v754, %v1010
        %v1523 = vadd.f32 %v755, %v1011
        %v1524 = vadd.f32 %v756, %v1012
        %v1525 = vadd.f32 %v757, %v1013
        %v1526 = vadd.f32 %v758, %v1014
        %v1527 = vadd.f32 %v759, %v1015
        %v1528 = vadd.f32 %v760, %v1016
        %v1529 = vadd.f32 %v761, %v1017
        %v1530 = vadd.f32 %v762, %v1018
        %v1531 = vadd.f32 %v763, %v1019
        %v1532 = vadd.f32 %v764, %v1020
        %v1533 = vadd.f32 %v765, %v1021
        %v1534 = vadd.f32 %v766, %v1022
        %v1535 = vadd.f32 %v767, %v1023
        %v1536 = vadd.f32 %v768, %v1024
        %1537 = vst [vmem:[%s251] sm:$0xff] %v1025
        %1538 = vst [vmem:[%s251 + $0x8] sm:$0xff] %v1026
        %1539 = vst [vmem:[%s251 + $0x10] sm:$0xff] %v1027
        %1540 = vst [vmem:[%s251 + $0x18] sm:$0xff] %v1028
        %1541 = vst [vmem:[%s251 + $0x20] sm:$0xff] %v1029
        %1542 = vst [vmem:[%s251 + $0x28] sm:$0xff] %v1030
        %1543 = vst [vmem:[%s251 + $0x30] sm:$0xff] %v1031
        %1544 = vst [vmem:[%s251 + $0x38] sm:$0xff] %v1032
        %1545 = vst [vmem:[%s251 + $0x40] sm:$0xff] %v1033
        %1546 = vst [vmem:[%s251 + $0x48] sm:$0xff] %v1034
        %1547 = vst [vmem:[%s251 + $0x50] sm:$0xff] %v1035
        %1548 = vst [vmem:[%s251 + $0x58] sm:$0xff] %v1036
        %1549 = vst [vmem:[%s251 + $0x60] sm:$0xff] %v1037
        %1550 = vst [vmem:[%s251 + $0x68] sm:$0xff] %v1038
        %1551 = vst [vmem:[%s251 + $0x70] sm:$0xff] %v1039
        %1552 = vst [vmem:[%s251 + $0x78] sm:$0xff] %v1040
        %1553 = vst [vmem:[%s251 + $0x80] sm:$0xff] %v1041
        %1554 = vst [vmem:[%s251 + $0x88] sm:$0xff] %v1042
        %1555 = vst [vmem:[%s251 + $0x90] sm:$0xff] %v1043
        %1556 = vst [vmem:[%s251 + $0x98] sm:$0xff] %v1044
        %1557 = vst [vmem:[%s251 + $0xa0] sm:$0xff] %v1045
        %1558 = vst [vmem:[%s251 + $0xa8] sm:$0xff] %v1046
        %1559 = vst [vmem:[%s251 + $0xb0] sm:$0xff] %v1047
        %1560 = vst [vmem:[%s251 + $0xb8] sm:$0xff] %v1048
        %1561 = vst [vmem:[%s251 + $0xc0] sm:$0xff] %v1049
        %1562 = vst [vmem:[%s251 + $0xc8] sm:$0xff] %v1050
        %1563 = vst [vmem:[%s251 + $0xd0] sm:$0xff] %v1051
        %1564 = vst [vmem:[%s251 + $0xd8] sm:$0xff] %v1052
        %1565 = vst [vmem:[%s251 + $0xe0] sm:$0xff] %v1053
        %1566 = vst [vmem:[%s251 + $0xe8] sm:$0xff] %v1054
        %1567 = vst [vmem:[%s251 + $0xf0] sm:$0xff] %v1055
        %1568 = vst [vmem:[%s251 + $0xf8] sm:$0xff] %v1056
        %1569 = vst [vmem:[%s251 + $0x100] sm:$0xff] %v1057
        %1570 = vst [vmem:[%s251 + $0x108] sm:$0xff] %v1058
        %1571 = vst [vmem:[%s251 + $0x110] sm:$0xff] %v1059
        %1572 = vst [vmem:[%s251 + $0x118] sm:$0xff] %v1060
        %1573 = vst [vmem:[%s251 + $0x120] sm:$0xff] %v1061
        %1574 = vst [vmem:[%s251 + $0x128] sm:$0xff] %v1062
        %1575 = vst [vmem:[%s251 + $0x130] sm:$0xff] %v1063
        %1576 = vst [vmem:[%s251 + $0x138] sm:$0xff] %v1064
        %1577 = vst [vmem:[%s251 + $0x140] sm:$0xff] %v1065
        %1578 = vst [vmem:[%s251 + $0x148] sm:$0xff] %v1066
        %1579 = vst [vmem:[%s251 + $0x150] sm:$0xff] %v1067
        %1580 = vst [vmem:[%s251 + $0x158] sm:$0xff] %v1068
        %1581 = vst [vmem:[%s251 + $0x160] sm:$0xff] %v1069
        %1582 = vst [vmem:[%s251 + $0x168] sm:$0xff] %v1070
        %1583 = vst [vmem:[%s251 + $0x170] sm:$0xff] %v1071
        %1584 = vst [vmem:[%s251 + $0x178] sm:$0xff] %v1072
        %1585 = vst [vmem:[%s251 + $0x180] sm:$0xff] %v1073
        %1586 = vst [vmem:[%s251 + $0x188] sm:$0xff] %v1074
        %1587 = vst [vmem:[%s251 + $0x190] sm:$0xff] %v1075
        %1588 = vst [vmem:[%s251 + $0x198] sm:$0xff] %v1076
        %1589 = vst [vmem:[%s251 + $0x1a0] sm:$0xff] %v1077
        %1590 = vst [vmem:[%s251 + $0x1a8] sm:$0xff] %v1078
        %1591 = vst [vmem:[%s251 + $0x1b0] sm:$0xff] %v1079
        %1592 = vst [vmem:[%s251 + $0x1b8] sm:$0xff] %v1080
        %1593 = vst [vmem:[%s251 + $0x1c0] sm:$0xff] %v1081
        %1594 = vst [vmem:[%s251 + $0x1c8] sm:$0xff] %v1082
        %1595 = vst [vmem:[%s251 + $0x1d0] sm:$0xff] %v1083
        %1596 = vst [vmem:[%s251 + $0x1d8] sm:$0xff] %v1084
        %1597 = vst [vmem:[%s251 + $0x1e0] sm:$0xff] %v1085
        %1598 = vst [vmem:[%s251 + $0x1e8] sm:$0xff] %v1086
        %1599 = vst [vmem:[%s251 + $0x1f0] sm:$0xff] %v1087
        %1600 = vst [vmem:[%s251 + $0x1f8] sm:$0xff] %v1088
        %1601 = vst [vmem:[%s251 + $0x200] sm:$0xff] %v1089
        %1602 = vst [vmem:[%s251 + $0x208] sm:$0xff] %v1090
        %1603 = vst [vmem:[%s251 + $0x210] sm:$0xff] %v1091
        %1604 = vst [vmem:[%s251 + $0x218] sm:$0xff] %v1092
        %1605 = vst [vmem:[%s251 + $0x220] sm:$0xff] %v1093
        %1606 = vst [vmem:[%s251 + $0x228] sm:$0xff] %v1094
        %1607 = vst [vmem:[%s251 + $0x230] sm:$0xff] %v1095
        %1608 = vst [vmem:[%s251 + $0x238] sm:$0xff] %v1096
        %1609 = vst [vmem:[%s251 + $0x240] sm:$0xff] %v1097
        %1610 = vst [vmem:[%s251 + $0x248] sm:$0xff] %v1098
        %1611 = vst [vmem:[%s251 + $0x250] sm:$0xff] %v1099
        %1612 = vst [vmem:[%s251 + $0x258] sm:$0xff] %v1100
        %1613 = vst [vmem:[%s251 + $0x260] sm:$0xff] %v1101
        %1614 = vst [vmem:[%s251 + $0x268] sm:$0xff] %v1102
        %1615 = vst [vmem:[%s251 + $0x270] sm:$0xff] %v1103
        %1616 = vst [vmem:[%s251 + $0x278] sm:$0xff] %v1104
        %1617 = vst [vmem:[%s251 + $0x280] sm:$0xff] %v1105
        %1618 = vst [vmem:[%s251 + $0x288] sm:$0xff] %v1106
        %1619 = vst [vmem:[%s251 + $0x290] sm:$0xff] %v1107
        %1620 = vst [vmem:[%s251 + $0x298] sm:$0xff] %v1108
        %1621 = vst [vmem:[%s251 + $0x2a0] sm:$0xff] %v1109
        %1622 = vst [vmem:[%s251 + $0x2a8] sm:$0xff] %v1110
        %1623 = vst [vmem:[%s251 + $0x2b0] sm:$0xff] %v1111
        %1624 = vst [vmem:[%s251 + $0x2b8] sm:$0xff] %v1112
        %1625 = vst [vmem:[%s251 + $0x2c0] sm:$0xff] %v1113
        %1626 = vst [vmem:[%s251 + $0x2c8] sm:$0xff] %v1114
        %1627 = vst [vmem:[%s251 + $0x2d0] sm:$0xff] %v1115
        %1628 = vst [vmem:[%s251 + $0x2d8] sm:$0xff] %v1116
        %1629 = vst [vmem:[%s251 + $0x2e0] sm:$0xff] %v1117
        %1630 = vst [vmem:[%s251 + $0x2e8] sm:$0xff] %v1118
        %1631 = vst [vmem:[%s251 + $0x2f0] sm:$0xff] %v1119
        %1632 = vst [vmem:[%s251 + $0x2f8] sm:$0xff] %v1120
        %1633 = vst [vmem:[%s251 + $0x300] sm:$0xff] %v1121
        %1634 = vst [vmem:[%s251 + $0x308] sm:$0xff] %v1122
        %1635 = vst [vmem:[%s251 + $0x310] sm:$0xff] %v1123
        %1636 = vst [vmem:[%s251 + $0x318] sm:$0xff] %v1124
        %1637 = vst [vmem:[%s251 + $0x320] sm:$0xff] %v1125
        %1638 = vst [vmem:[%s251 + $0x328] sm:$0xff] %v1126
        %1639 = vst [vmem:[%s251 + $0x330] sm:$0xff] %v1127
        %1640 = vst [vmem:[%s251 + $0x338] sm:$0xff] %v1128
        %1641 = vst [vmem:[%s251 + $0x340] sm:$0xff] %v1129
        %1642 = vst [vmem:[%s251 + $0x348] sm:$0xff] %v1130
        %1643 = vst [vmem:[%s251 + $0x350] sm:$0xff] %v1131
        %1644 = vst [vmem:[%s251 + $0x358] sm:$0xff] %v1132
        %1645 = vst [vmem:[%s251 + $0x360] sm:$0xff] %v1133
        %1646 = vst [vmem:[%s251 + $0x368] sm:$0xff] %v1134
        %1647 = vst [vmem:[%s251 + $0x370] sm:$0xff] %v1135
        %1648 = vst [vmem:[%s251 + $0x378] sm:$0xff] %v1136
        %1649 = vst [vmem:[%s251 + $0x380] sm:$0xff] %v1137
        %1650 = vst [vmem:[%s251 + $0x388] sm:$0xff] %v1138
        %1651 = vst [vmem:[%s251 + $0x390] sm:$0xff] %v1139
        %1652 = vst [vmem:[%s251 + $0x398] sm:$0xff] %v1140
        %1653 = vst [vmem:[%s251 + $0x3a0] sm:$0xff] %v1141
        %1654 = vst [vmem:[%s251 + $0x3a8] sm:$0xff] %v1142
        %1655 = vst [vmem:[%s251 + $0x3b0] sm:$0xff] %v1143
        %1656 = vst [vmem:[%s251 + $0x3b8] sm:$0xff] %v1144
        %1657 = vst [vmem:[%s251 + $0x3c0] sm:$0xff] %v1145
        %1658 = vst [vmem:[%s251 + $0x3c8] sm:$0xff] %v1146
        %1659 = vst [vmem:[%s251 + $0x3d0] sm:$0xff] %v1147
        %1660 = vst [vmem:[%s251 + $0x3d8] sm:$0xff] %v1148
        %1661 = vst [vmem:[%s251 + $0x3e0] sm:$0xff] %v1149
        %1662 = vst [vmem:[%s251 + $0x3e8] sm:$0xff] %v1150
        %1663 = vst [vmem:[%s251 + $0x3f0] sm:$0xff] %v1151
        %1664 = vst [vmem:[%s251 + $0x3f8] sm:$0xff] %v1152
        %1665 = vst [vmem:[%s251 + $0x400] sm:$0xff] %v1153
        %1666 = vst [vmem:[%s251 + $0x408] sm:$0xff] %v1154
        %1667 = vst [vmem:[%s251 + $0x410] sm:$0xff] %v1155
        %1668 = vst [vmem:[%s251 + $0x418] sm:$0xff] %v1156
        %1669 = vst [vmem:[%s251 + $0x420] sm:$0xff] %v1157
        %1670 = vst [vmem:[%s251 + $0x428] sm:$0xff] %v1158
        %1671 = vst [vmem:[%s251 + $0x430] sm:$0xff] %v1159
        %1672 = vst [vmem:[%s251 + $0x438] sm:$0xff] %v1160
        %1673 = vst [vmem:[%s251 + $0x440] sm:$0xff] %v1161
        %1674 = vst [vmem:[%s251 + $0x448] sm:$0xff] %v1162
        %1675 = vst [vmem:[%s251 + $0x450] sm:$0xff] %v1163
        %1676 = vst [vmem:[%s251 + $0x458] sm:$0xff] %v1164
        %1677 = vst [vmem:[%s251 + $0x460] sm:$0xff] %v1165
        %1678 = vst [vmem:[%s251 + $0x468] sm:$0xff] %v1166
        %1679 = vst [vmem:[%s251 + $0x470] sm:$0xff] %v1167
        %1680 = vst [vmem:[%s251 + $0x478] sm:$0xff] %v1168
        %1681 = vst [vmem:[%s251 + $0x480] sm:$0xff] %v1169
        %1682 = vst [vmem:[%s251 + $0x488] sm:$0xff] %v1170
        %1683 = vst [vmem:[%s251 + $0x490] sm:$0xff] %v1171
        %1684 = vst [vmem:[%s251 + $0x498] sm:$0xff] %v1172
        %1685 = vst [vmem:[%s251 + $0x4a0] sm:$0xff] %v1173
        %1686 = vst [vmem:[%s251 + $0x4a8] sm:$0xff] %v1174
        %1687 = vst [vmem:[%s251 + $0x4b0] sm:$0xff] %v1175
        %1688 = vst [vmem:[%s251 + $0x4b8] sm:$0xff] %v1176
        %1689 = vst [vmem:[%s251 + $0x4c0] sm:$0xff] %v1177
        %1690 = vst [vmem:[%s251 + $0x4c8] sm:$0xff] %v1178
        %1691 = vst [vmem:[%s251 + $0x4d0] sm:$0xff] %v1179
        %1692 = vst [vmem:[%s251 + $0x4d8] sm:$0xff] %v1180
        %1693 = vst [vmem:[%s251 + $0x4e0] sm:$0xff] %v1181
        %1694 = vst [vmem:[%s251 + $0x4e8] sm:$0xff] %v1182
        %1695 = vst [vmem:[%s251 + $0x4f0] sm:$0xff] %v1183
        %1696 = vst [vmem:[%s251 + $0x4f8] sm:$0xff] %v1184
        %1697 = vst [vmem:[%s251 + $0x500] sm:$0xff] %v1185
        %1698 = vst [vmem:[%s251 + $0x508] sm:$0xff] %v1186
        %1699 = vst [vmem:[%s251 + $0x510] sm:$0xff] %v1187
        %1700 = vst [vmem:[%s251 + $0x518] sm:$0xff] %v1188
        %1701 = vst [vmem:[%s251 + $0x520] sm:$0xff] %v1189
        %1702 = vst [vmem:[%s251 + $0x528] sm:$0xff] %v1190
        %1703 = vst [vmem:[%s251 + $0x530] sm:$0xff] %v1191
        %1704 = vst [vmem:[%s251 + $0x538] sm:$0xff] %v1192
        %1705 = vst [vmem:[%s251 + $0x540] sm:$0xff] %v1193
        %1706 = vst [vmem:[%s251 + $0x548] sm:$0xff] %v1194
        %1707 = vst [vmem:[%s251 + $0x550] sm:$0xff] %v1195
        %1708 = vst [vmem:[%s251 + $0x558] sm:$0xff] %v1196
        %1709 = vst [vmem:[%s251 + $0x560] sm:$0xff] %v1197
        %1710 = vst [vmem:[%s251 + $0x568] sm:$0xff] %v1198
        %1711 = vst [vmem:[%s251 + $0x570] sm:$0xff] %v1199
        %1712 = vst [vmem:[%s251 + $0x578] sm:$0xff] %v1200
        %1713 = vst [vmem:[%s251 + $0x580] sm:$0xff] %v1201
        %1714 = vst [vmem:[%s251 + $0x588] sm:$0xff] %v1202
        %1715 = vst [vmem:[%s251 + $0x590] sm:$0xff] %v1203
        %1716 = vst [vmem:[%s251 + $0x598] sm:$0xff] %v1204
        %1717 = vst [vmem:[%s251 + $0x5a0] sm:$0xff] %v1205
        %1718 = vst [vmem:[%s251 + $0x5a8] sm:$0xff] %v1206
        %1719 = vst [vmem:[%s251 + $0x5b0] sm:$0xff] %v1207
        %1720 = vst [vmem:[%s251 + $0x5b8] sm:$0xff] %v1208
        %1721 = vst [vmem:[%s251 + $0x5c0] sm:$0xff] %v1209
        %1722 = vst [vmem:[%s251 + $0x5c8] sm:$0xff] %v1210
        %1723 = vst [vmem:[%s251 + $0x5d0] sm:$0xff] %v1211
        %1724 = vst [vmem:[%s251 + $0x5d8] sm:$0xff] %v1212
        %1725 = vst [vmem:[%s251 + $0x5e0] sm:$0xff] %v1213
        %1726 = vst [vmem:[%s251 + $0x5e8] sm:$0xff] %v1214
        %1727 = vst [vmem:[%s251 + $0x5f0] sm:$0xff] %v1215
        %1728 = vst [vmem:[%s251 + $0x5f8] sm:$0xff] %v1216
        %1729 = vst [vmem:[%s251 + $0x600] sm:$0xff] %v1217
        %1730 = vst [vmem:[%s251 + $0x608] sm:$0xff] %v1218
        %1731 = vst [vmem:[%s251 + $0x610] sm:$0xff] %v1219
        %1732 = vst [vmem:[%s251 + $0x618] sm:$0xff] %v1220
        %1733 = vst [vmem:[%s251 + $0x620] sm:$0xff] %v1221
        %1734 = vst [vmem:[%s251 + $0x628] sm:$0xff] %v1222
        %1735 = vst [vmem:[%s251 + $0x630] sm:$0xff] %v1223
        %1736 = vst [vmem:[%s251 + $0x638] sm:$0xff] %v1224
        %1737 = vst [vmem:[%s251 + $0x640] sm:$0xff] %v1225
        %1738 = vst [vmem:[%s251 + $0x648] sm:$0xff] %v1226
        %1739 = vst [vmem:[%s251 + $0x650] sm:$0xff] %v1227
        %1740 = vst [vmem:[%s251 + $0x658] sm:$0xff] %v1228
        %1741 = vst [vmem:[%s251 + $0x660] sm:$0xff] %v1229
        %1742 = vst [vmem:[%s251 + $0x668] sm:$0xff] %v1230
        %1743 = vst [vmem:[%s251 + $0x670] sm:$0xff] %v1231
        %1744 = vst [vmem:[%s251 + $0x678] sm:$0xff] %v1232
        %1745 = vst [vmem:[%s251 + $0x680] sm:$0xff] %v1233
        %1746 = vst [vmem:[%s251 + $0x688] sm:$0xff] %v1234
        %1747 = vst [vmem:[%s251 + $0x690] sm:$0xff] %v1235
        %1748 = vst [vmem:[%s251 + $0x698] sm:$0xff] %v1236
        %1749 = vst [vmem:[%s251 + $0x6a0] sm:$0xff] %v1237
        %1750 = vst [vmem:[%s251 + $0x6a8] sm:$0xff] %v1238
        %1751 = vst [vmem:[%s251 + $0x6b0] sm:$0xff] %v1239
        %1752 = vst [vmem:[%s251 + $0x6b8] sm:$0xff] %v1240
        %1753 = vst [vmem:[%s251 + $0x6c0] sm:$0xff] %v1241
        %1754 = vst [vmem:[%s251 + $0x6c8] sm:$0xff] %v1242
        %1755 = vst [vmem:[%s251 + $0x6d0] sm:$0xff] %v1243
        %1756 = vst [vmem:[%s251 + $0x6d8] sm:$0xff] %v1244
        %1757 = vst [vmem:[%s251 + $0x6e0] sm:$0xff] %v1245
        %1758 = vst [vmem:[%s251 + $0x6e8] sm:$0xff] %v1246
        %1759 = vst [vmem:[%s251 + $0x6f0] sm:$0xff] %v1247
        %1760 = vst [vmem:[%s251 + $0x6f8] sm:$0xff] %v1248
        %1761 = vst [vmem:[%s251 + $0x700] sm:$0xff] %v1249
        %1762 = vst [vmem:[%s251 + $0x708] sm:$0xff] %v1250
        %1763 = vst [vmem:[%s251 + $0x710] sm:$0xff] %v1251
        %1764 = vst [vmem:[%s251 + $0x718] sm:$0xff] %v1252
        %1765 = vst [vmem:[%s251 + $0x720] sm:$0xff] %v1253
        %1766 = vst [vmem:[%s251 + $0x728] sm:$0xff] %v1254
        %1767 = vst [vmem:[%s251 + $0x730] sm:$0xff] %v1255
        %1768 = vst [vmem:[%s251 + $0x738] sm:$0xff] %v1256
        %1769 = vst [vmem:[%s251 + $0x740] sm:$0xff] %v1257
        %1770 = vst [vmem:[%s251 + $0x748] sm:$0xff] %v1258
        %1771 = vst [vmem:[%s251 + $0x750] sm:$0xff] %v1259
        %1772 = vst [vmem:[%s251 + $0x758] sm:$0xff] %v1260
        %1773 = vst [vmem:[%s251 + $0x760] sm:$0xff] %v1261
        %1774 = vst [vmem:[%s251 + $0x768] sm:$0xff] %v1262
        %1775 = vst [vmem:[%s251 + $0x770] sm:$0xff] %v1263
        %1776 = vst [vmem:[%s251 + $0x778] sm:$0xff] %v1264
        %1777 = vst [vmem:[%s251 + $0x780] sm:$0xff] %v1265
        %1778 = vst [vmem:[%s251 + $0x788] sm:$0xff] %v1266
        %1779 = vst [vmem:[%s251 + $0x790] sm:$0xff] %v1267
        %1780 = vst [vmem:[%s251 + $0x798] sm:$0xff] %v1268
        %1781 = vst [vmem:[%s251 + $0x7a0] sm:$0xff] %v1269
        %1782 = vst [vmem:[%s251 + $0x7a8] sm:$0xff] %v1270
        %1783 = vst [vmem:[%s251 + $0x7b0] sm:$0xff] %v1271
        %1784 = vst [vmem:[%s251 + $0x7b8] sm:$0xff] %v1272
        %1785 = vst [vmem:[%s251 + $0x7c0] sm:$0xff] %v1273
        %1786 = vst [vmem:[%s251 + $0x7c8] sm:$0xff] %v1274
        %1787 = vst [vmem:[%s251 + $0x7d0] sm:$0xff] %v1275
        %1788 = vst [vmem:[%s251 + $0x7d8] sm:$0xff] %v1276
        %1789 = vst [vmem:[%s251 + $0x7e0] sm:$0xff] %v1277
        %1790 = vst [vmem:[%s251 + $0x7e8] sm:$0xff] %v1278
        %1791 = vst [vmem:[%s251 + $0x7f0] sm:$0xff] %v1279
        %1792 = vst [vmem:[%s251 + $0x7f8] sm:$0xff] %v1280
        %1793 = vst [vmem:[%s251 + $0x800] sm:$0xff] %v1281
        %1794 = vst [vmem:[%s251 + $0x808] sm:$0xff] %v1282
        %1795 = vst [vmem:[%s251 + $0x810] sm:$0xff] %v1283
        %1796 = vst [vmem:[%s251 + $0x818] sm:$0xff] %v1284
        %1797 = vst [vmem:[%s251 + $0x820] sm:$0xff] %v1285
        %1798 = vst [vmem:[%s251 + $0x828] sm:$0xff] %v1286
        %1799 = vst [vmem:[%s251 + $0x830] sm:$0xff] %v1287
        %1800 = vst [vmem:[%s251 + $0x838] sm:$0xff] %v1288
        %1801 = vst [vmem:[%s251 + $0x840] sm:$0xff] %v1289
        %1802 = vst [vmem:[%s251 + $0x848] sm:$0xff] %v1290
        %1803 = vst [vmem:[%s251 + $0x850] sm:$0xff] %v1291
        %1804 = vst [vmem:[%s251 + $0x858] sm:$0xff] %v1292
        %1805 = vst [vmem:[%s251 + $0x860] sm:$0xff] %v1293
        %1806 = vst [vmem:[%s251 + $0x868] sm:$0xff] %v1294
        %1807 = vst [vmem:[%s251 + $0x870] sm:$0xff] %v1295
        %1808 = vst [vmem:[%s251 + $0x878] sm:$0xff] %v1296
        %1809 = vst [vmem:[%s251 + $0x880] sm:$0xff] %v1297
        %1810 = vst [vmem:[%s251 + $0x888] sm:$0xff] %v1298
        %1811 = vst [vmem:[%s251 + $0x890] sm:$0xff] %v1299
        %1812 = vst [vmem:[%s251 + $0x898] sm:$0xff] %v1300
        %1813 = vst [vmem:[%s251 + $0x8a0] sm:$0xff] %v1301
        %1814 = vst [vmem:[%s251 + $0x8a8] sm:$0xff] %v1302
        %1815 = vst [vmem:[%s251 + $0x8b0] sm:$0xff] %v1303
        %1816 = vst [vmem:[%s251 + $0x8b8] sm:$0xff] %v1304
        %1817 = vst [vmem:[%s251 + $0x8c0] sm:$0xff] %v1305
        %1818 = vst [vmem:[%s251 + $0x8c8] sm:$0xff] %v1306
        %1819 = vst [vmem:[%s251 + $0x8d0] sm:$0xff] %v1307
        %1820 = vst [vmem:[%s251 + $0x8d8] sm:$0xff] %v1308
        %1821 = vst [vmem:[%s251 + $0x8e0] sm:$0xff] %v1309
        %1822 = vst [vmem:[%s251 + $0x8e8] sm:$0xff] %v1310
        %1823 = vst [vmem:[%s251 + $0x8f0] sm:$0xff] %v1311
        %1824 = vst [vmem:[%s251 + $0x8f8] sm:$0xff] %v1312
        %1825 = vst [vmem:[%s251 + $0x900] sm:$0xff] %v1313
        %1826 = vst [vmem:[%s251 + $0x908] sm:$0xff] %v1314
        %1827 = vst [vmem:[%s251 + $0x910] sm:$0xff] %v1315
        %1828 = vst [vmem:[%s251 + $0x918] sm:$0xff] %v1316
        %1829 = vst [vmem:[%s251 + $0x920] sm:$0xff] %v1317
        %1830 = vst [vmem:[%s251 + $0x928] sm:$0xff] %v1318
        %1831 = vst [vmem:[%s251 + $0x930] sm:$0xff] %v1319
        %1832 = vst [vmem:[%s251 + $0x938] sm:$0xff] %v1320
        %1833 = vst [vmem:[%s251 + $0x940] sm:$0xff] %v1321
        %1834 = vst [vmem:[%s251 + $0x948] sm:$0xff] %v1322
        %1835 = vst [vmem:[%s251 + $0x950] sm:$0xff] %v1323
        %1836 = vst [vmem:[%s251 + $0x958] sm:$0xff] %v1324
        %1837 = vst [vmem:[%s251 + $0x960] sm:$0xff] %v1325
        %1838 = vst [vmem:[%s251 + $0x968] sm:$0xff] %v1326
        %1839 = vst [vmem:[%s251 + $0x970] sm:$0xff] %v1327
        %1840 = vst [vmem:[%s251 + $0x978] sm:$0xff] %v1328
        %1841 = vst [vmem:[%s251 + $0x980] sm:$0xff] %v1329
        %1842 = vst [vmem:[%s251 + $0x988] sm:$0xff] %v1330
        %1843 = vst [vmem:[%s251 + $0x990] sm:$0xff] %v1331
        %1844 = vst [vmem:[%s251 + $0x998] sm:$0xff] %v1332
        %1845 = vst [vmem:[%s251 + $0x9a0] sm:$0xff] %v1333
        %1846 = vst [vmem:[%s251 + $0x9a8] sm:$0xff] %v1334
        %1847 = vst [vmem:[%s251 + $0x9b0] sm:$0xff] %v1335
        %1848 = vst [vmem:[%s251 + $0x9b8] sm:$0xff] %v1336
        %1849 = vst [vmem:[%s251 + $0x9c0] sm:$0xff] %v1337
        %1850 = vst [vmem:[%s251 + $0x9c8] sm:$0xff] %v1338
        %1851 = vst [vmem:[%s251 + $0x9d0] sm:$0xff] %v1339
        %1852 = vst [vmem:[%s251 + $0x9d8] sm:$0xff] %v1340
        %1853 = vst [vmem:[%s251 + $0x9e0] sm:$0xff] %v1341
        %1854 = vst [vmem:[%s251 + $0x9e8] sm:$0xff] %v1342
        %1855 = vst [vmem:[%s251 + $0x9f0] sm:$0xff] %v1343
        %1856 = vst [vmem:[%s251 + $0x9f8] sm:$0xff] %v1344
        %1857 = vst [vmem:[%s251 + $0xa00] sm:$0xff] %v1345
        %1858 = vst [vmem:[%s251 + $0xa08] sm:$0xff] %v1346
        %1859 = vst [vmem:[%s251 + $0xa10] sm:$0xff] %v1347
        %1860 = vst [vmem:[%s251 + $0xa18] sm:$0xff] %v1348
        %1861 = vst [vmem:[%s251 + $0xa20] sm:$0xff] %v1349
        %1862 = vst [vmem:[%s251 + $0xa28] sm:$0xff] %v1350
        %1863 = vst [vmem:[%s251 + $0xa30] sm:$0xff] %v1351
        %1864 = vst [vmem:[%s251 + $0xa38] sm:$0xff] %v1352
        %1865 = vst [vmem:[%s251 + $0xa40] sm:$0xff] %v1353
        %1866 = vst [vmem:[%s251 + $0xa48] sm:$0xff] %v1354
        %1867 = vst [vmem:[%s251 + $0xa50] sm:$0xff] %v1355
        %1868 = vst [vmem:[%s251 + $0xa58] sm:$0xff] %v1356
        %1869 = vst [vmem:[%s251 + $0xa60] sm:$0xff] %v1357
        %1870 = vst [vmem:[%s251 + $0xa68] sm:$0xff] %v1358
        %1871 = vst [vmem:[%s251 + $0xa70] sm:$0xff] %v1359
        %1872 = vst [vmem:[%s251 + $0xa78] sm:$0xff] %v1360
        %1873 = vst [vmem:[%s251 + $0xa80] sm:$0xff] %v1361
        %1874 = vst [vmem:[%s251 + $0xa88] sm:$0xff] %v1362
        %1875 = vst [vmem:[%s251 + $0xa90] sm:$0xff] %v1363
        %1876 = vst [vmem:[%s251 + $0xa98] sm:$0xff] %v1364
        %1877 = vst [vmem:[%s251 + $0xaa0] sm:$0xff] %v1365
        %1878 = vst [vmem:[%s251 + $0xaa8] sm:$0xff] %v1366
        %1879 = vst [vmem:[%s251 + $0xab0] sm:$0xff] %v1367
        %1880 = vst [vmem:[%s251 + $0xab8] sm:$0xff] %v1368
        %1881 = vst [vmem:[%s251 + $0xac0] sm:$0xff] %v1369
        %1882 = vst [vmem:[%s251 + $0xac8] sm:$0xff] %v1370
        %1883 = vst [vmem:[%s251 + $0xad0] sm:$0xff] %v1371
        %1884 = vst [vmem:[%s251 + $0xad8] sm:$0xff] %v1372
        %1885 = vst [vmem:[%s251 + $0xae0] sm:$0xff] %v1373
        %1886 = vst [vmem:[%s251 + $0xae8] sm:$0xff] %v1374
        %1887 = vst [vmem:[%s251 + $0xaf0] sm:$0xff] %v1375
        %1888 = vst [vmem:[%s251 + $0xaf8] sm:$0xff] %v1376
        %1889 = vst [vmem:[%s251 + $0xb00] sm:$0xff] %v1377
        %1890 = vst [vmem:[%s251 + $0xb08] sm:$0xff] %v1378
        %1891 = vst [vmem:[%s251 + $0xb10] sm:$0xff] %v1379
        %1892 = vst [vmem:[%s251 + $0xb18] sm:$0xff] %v1380
        %1893 = vst [vmem:[%s251 + $0xb20] sm:$0xff] %v1381
        %1894 = vst [vmem:[%s251 + $0xb28] sm:$0xff] %v1382
        %1895 = vst [vmem:[%s251 + $0xb30] sm:$0xff] %v1383
        %1896 = vst [vmem:[%s251 + $0xb38] sm:$0xff] %v1384
        %1897 = vst [vmem:[%s251 + $0xb40] sm:$0xff] %v1385
        %1898 = vst [vmem:[%s251 + $0xb48] sm:$0xff] %v1386
        %1899 = vst [vmem:[%s251 + $0xb50] sm:$0xff] %v1387
        %1900 = vst [vmem:[%s251 + $0xb58] sm:$0xff] %v1388
        %1901 = vst [vmem:[%s251 + $0xb60] sm:$0xff] %v1389
        %1902 = vst [vmem:[%s251 + $0xb68] sm:$0xff] %v1390
        %1903 = vst [vmem:[%s251 + $0xb70] sm:$0xff] %v1391
        %1904 = vst [vmem:[%s251 + $0xb78] sm:$0xff] %v1392
        %1905 = vst [vmem:[%s251 + $0xb80] sm:$0xff] %v1393
        %1906 = vst [vmem:[%s251 + $0xb88] sm:$0xff] %v1394
        %1907 = vst [vmem:[%s251 + $0xb90] sm:$0xff] %v1395
        %1908 = vst [vmem:[%s251 + $0xb98] sm:$0xff] %v1396
        %1909 = vst [vmem:[%s251 + $0xba0] sm:$0xff] %v1397
        %1910 = vst [vmem:[%s251 + $0xba8] sm:$0xff] %v1398
        %1911 = vst [vmem:[%s251 + $0xbb0] sm:$0xff] %v1399
        %1912 = vst [vmem:[%s251 + $0xbb8] sm:$0xff] %v1400
        %1913 = vst [vmem:[%s251 + $0xbc0] sm:$0xff] %v1401
        %1914 = vst [vmem:[%s251 + $0xbc8] sm:$0xff] %v1402
        %1915 = vst [vmem:[%s251 + $0xbd0] sm:$0xff] %v1403
        %1916 = vst [vmem:[%s251 + $0xbd8] sm:$0xff] %v1404
        %1917 = vst [vmem:[%s251 + $0xbe0] sm:$0xff] %v1405
        %1918 = vst [vmem:[%s251 + $0xbe8] sm:$0xff] %v1406
        %1919 = vst [vmem:[%s251 + $0xbf0] sm:$0xff] %v1407
        %1920 = vst [vmem:[%s251 + $0xbf8] sm:$0xff] %v1408
        %1921 = vst [vmem:[%s251 + $0xc00] sm:$0xff] %v1409
        %1922 = vst [vmem:[%s251 + $0xc08] sm:$0xff] %v1410
        %1923 = vst [vmem:[%s251 + $0xc10] sm:$0xff] %v1411
        %1924 = vst [vmem:[%s251 + $0xc18] sm:$0xff] %v1412
        %1925 = vst [vmem:[%s251 + $0xc20] sm:$0xff] %v1413
        %1926 = vst [vmem:[%s251 + $0xc28] sm:$0xff] %v1414
        %1927 = vst [vmem:[%s251 + $0xc30] sm:$0xff] %v1415
        %1928 = vst [vmem:[%s251 + $0xc38] sm:$0xff] %v1416
        %1929 = vst [vmem:[%s251 + $0xc40] sm:$0xff] %v1417
        %1930 = vst [vmem:[%s251 + $0xc48] sm:$0xff] %v1418
        %1931 = vst [vmem:[%s251 + $0xc50] sm:$0xff] %v1419
        %1932 = vst [vmem:[%s251 + $0xc58] sm:$0xff] %v1420
        %1933 = vst [vmem:[%s251 + $0xc60] sm:$0xff] %v1421
        %1934 = vst [vmem:[%s251 + $0xc68] sm:$0xff] %v1422
        %1935 = vst [vmem:[%s251 + $0xc70] sm:$0xff] %v1423
        %1936 = vst [vmem:[%s251 + $0xc78] sm:$0xff] %v1424
        %1937 = vst [vmem:[%s251 + $0xc80] sm:$0xff] %v1425
        %1938 = vst [vmem:[%s251 + $0xc88] sm:$0xff] %v1426
        %1939 = vst [vmem:[%s251 + $0xc90] sm:$0xff] %v1427
        %1940 = vst [vmem:[%s251 + $0xc98] sm:$0xff] %v1428
        %1941 = vst [vmem:[%s251 + $0xca0] sm:$0xff] %v1429
        %1942 = vst [vmem:[%s251 + $0xca8] sm:$0xff] %v1430
        %1943 = vst [vmem:[%s251 + $0xcb0] sm:$0xff] %v1431
        %1944 = vst [vmem:[%s251 + $0xcb8] sm:$0xff] %v1432
        %1945 = vst [vmem:[%s251 + $0xcc0] sm:$0xff] %v1433
        %1946 = vst [vmem:[%s251 + $0xcc8] sm:$0xff] %v1434
        %1947 = vst [vmem:[%s251 + $0xcd0] sm:$0xff] %v1435
        %1948 = vst [vmem:[%s251 + $0xcd8] sm:$0xff] %v1436
        %1949 = vst [vmem:[%s251 + $0xce0] sm:$0xff] %v1437
        %1950 = vst [vmem:[%s251 + $0xce8] sm:$0xff] %v1438
        %1951 = vst [vmem:[%s251 + $0xcf0] sm:$0xff] %v1439
        %1952 = vst [vmem:[%s251 + $0xcf8] sm:$0xff] %v1440
        %1953 = vst [vmem:[%s251 + $0xd00] sm:$0xff] %v1441
        %1954 = vst [vmem:[%s251 + $0xd08] sm:$0xff] %v1442
        %1955 = vst [vmem:[%s251 + $0xd10] sm:$0xff] %v1443
        %1956 = vst [vmem:[%s251 + $0xd18] sm:$0xff] %v1444
        %1957 = vst [vmem:[%s251 + $0xd20] sm:$0xff] %v1445
        %1958 = vst [vmem:[%s251 + $0xd28] sm:$0xff] %v1446
        %1959 = vst [vmem:[%s251 + $0xd30] sm:$0xff] %v1447
        %1960 = vst [vmem:[%s251 + $0xd38] sm:$0xff] %v1448
        %1961 = vst [vmem:[%s251 + $0xd40] sm:$0xff] %v1449
        %1962 = vst [vmem:[%s251 + $0xd48] sm:$0xff] %v1450
        %1963 = vst [vmem:[%s251 + $0xd50] sm:$0xff] %v1451
        %1964 = vst [vmem:[%s251 + $0xd58] sm:$0xff] %v1452
        %1965 = vst [vmem:[%s251 + $0xd60] sm:$0xff] %v1453
        %1966 = vst [vmem:[%s251 + $0xd68] sm:$0xff] %v1454
        %1967 = vst [vmem:[%s251 + $0xd70] sm:$0xff] %v1455
        %1968 = vst [vmem:[%s251 + $0xd78] sm:$0xff] %v1456
        %1969 = vst [vmem:[%s251 + $0xd80] sm:$0xff] %v1457
        %1970 = vst [vmem:[%s251 + $0xd88] sm:$0xff] %v1458
        %1971 = vst [vmem:[%s251 + $0xd90] sm:$0xff] %v1459
        %1972 = vst [vmem:[%s251 + $0xd98] sm:$0xff] %v1460
        %1973 = vst [vmem:[%s251 + $0xda0] sm:$0xff] %v1461
        %1974 = vst [vmem:[%s251 + $0xda8] sm:$0xff] %v1462
        %1975 = vst [vmem:[%s251 + $0xdb0] sm:$0xff] %v1463
        %1976 = vst [vmem:[%s251 + $0xdb8] sm:$0xff] %v1464
        %1977 = vst [vmem:[%s251 + $0xdc0] sm:$0xff] %v1465
        %1978 = vst [vmem:[%s251 + $0xdc8] sm:$0xff] %v1466
        %1979 = vst [vmem:[%s251 + $0xdd0] sm:$0xff] %v1467
        %1980 = vst [vmem:[%s251 + $0xdd8] sm:$0xff] %v1468
        %1981 = vst [vmem:[%s251 + $0xde0] sm:$0xff] %v1469
        %1982 = vst [vmem:[%s251 + $0xde8] sm:$0xff] %v1470
        %1983 = vst [vmem:[%s251 + $0xdf0] sm:$0xff] %v1471
        %1984 = vst [vmem:[%s251 + $0xdf8] sm:$0xff] %v1472
        %1985 = vst [vmem:[%s251 + $0xe00] sm:$0xff] %v1473
        %1986 = vst [vmem:[%s251 + $0xe08] sm:$0xff] %v1474
        %1987 = vst [vmem:[%s251 + $0xe10] sm:$0xff] %v1475
        %1988 = vst [vmem:[%s251 + $0xe18] sm:$0xff] %v1476
        %1989 = vst [vmem:[%s251 + $0xe20] sm:$0xff] %v1477
        %1990 = vst [vmem:[%s251 + $0xe28] sm:$0xff] %v1478
        %1991 = vst [vmem:[%s251 + $0xe30] sm:$0xff] %v1479
        %1992 = vst [vmem:[%s251 + $0xe38] sm:$0xff] %v1480
        %1993 = vst [vmem:[%s251 + $0xe40] sm:$0xff] %v1481
        %1994 = vst [vmem:[%s251 + $0xe48] sm:$0xff] %v1482
        %1995 = vst [vmem:[%s251 + $0xe50] sm:$0xff] %v1483
        %1996 = vst [vmem:[%s251 + $0xe58] sm:$0xff] %v1484
        %1997 = vst [vmem:[%s251 + $0xe60] sm:$0xff] %v1485
        %1998 = vst [vmem:[%s251 + $0xe68] sm:$0xff] %v1486
        %1999 = vst [vmem:[%s251 + $0xe70] sm:$0xff] %v1487
        %2000 = vst [vmem:[%s251 + $0xe78] sm:$0xff] %v1488
        %2001 = vst [vmem:[%s251 + $0xe80] sm:$0xff] %v1489
        %2002 = vst [vmem:[%s251 + $0xe88] sm:$0xff] %v1490
        %2003 = vst [vmem:[%s251 + $0xe90] sm:$0xff] %v1491
        %2004 = vst [vmem:[%s251 + $0xe98] sm:$0xff] %v1492
        %2005 = vst [vmem:[%s251 + $0xea0] sm:$0xff] %v1493
        %2006 = vst [vmem:[%s251 + $0xea8] sm:$0xff] %v1494
        %2007 = vst [vmem:[%s251 + $0xeb0] sm:$0xff] %v1495
        %2008 = vst [vmem:[%s251 + $0xeb8] sm:$0xff] %v1496
        %2009 = vst [vmem:[%s251 + $0xec0] sm:$0xff] %v1497
        %2010 = vst [vmem:[%s251 + $0xec8] sm:$0xff] %v1498
        %2011 = vst [vmem:[%s251 + $0xed0] sm:$0xff] %v1499
        %2012 = vst [vmem:[%s251 + $0xed8] sm:$0xff] %v1500
        %2013 = vst [vmem:[%s251 + $0xee0] sm:$0xff] %v1501
        %2014 = vst [vmem:[%s251 + $0xee8] sm:$0xff] %v1502
        %2015 = vst [vmem:[%s251 + $0xef0] sm:$0xff] %v1503
        %2016 = vst [vmem:[%s251 + $0xef8] sm:$0xff] %v1504
        %2017 = vst [vmem:[%s251 + $0xf00] sm:$0xff] %v1505
        %2018 = vst [vmem:[%s251 + $0xf08] sm:$0xff] %v1506
        %2019 = vst [vmem:[%s251 + $0xf10] sm:$0xff] %v1507
        %2020 = vst [vmem:[%s251 + $0xf18] sm:$0xff] %v1508
        %2021 = vst [vmem:[%s251 + $0xf20] sm:$0xff] %v1509
        %2022 = vst [vmem:[%s251 + $0xf28] sm:$0xff] %v1510
        %2023 = vst [vmem:[%s251 + $0xf30] sm:$0xff] %v1511
        %2024 = vst [vmem:[%s251 + $0xf38] sm:$0xff] %v1512
        %2025 = vst [vmem:[%s251 + $0xf40] sm:$0xff] %v1513
        %2026 = vst [vmem:[%s251 + $0xf48] sm:$0xff] %v1514
        %2027 = vst [vmem:[%s251 + $0xf50] sm:$0xff] %v1515
        %2028 = vst [vmem:[%s251 + $0xf58] sm:$0xff] %v1516
        %2029 = vst [vmem:[%s251 + $0xf60] sm:$0xff] %v1517
        %2030 = vst [vmem:[%s251 + $0xf68] sm:$0xff] %v1518
        %2031 = vst [vmem:[%s251 + $0xf70] sm:$0xff] %v1519
        %2032 = vst [vmem:[%s251 + $0xf78] sm:$0xff] %v1520
        %2033 = vst [vmem:[%s251 + $0xf80] sm:$0xff] %v1521
        %2034 = vst [vmem:[%s251 + $0xf88] sm:$0xff] %v1522
        %2035 = vst [vmem:[%s251 + $0xf90] sm:$0xff] %v1523
        %2036 = vst [vmem:[%s251 + $0xf98] sm:$0xff] %v1524
        %2037 = vst [vmem:[%s251 + $0xfa0] sm:$0xff] %v1525
        %2038 = vst [vmem:[%s251 + $0xfa8] sm:$0xff] %v1526
        %2039 = vst [vmem:[%s251 + $0xfb0] sm:$0xff] %v1527
        %2040 = vst [vmem:[%s251 + $0xfb8] sm:$0xff] %v1528
        %2041 = vst [vmem:[%s251 + $0xfc0] sm:$0xff] %v1529
        %2042 = vst [vmem:[%s251 + $0xfc8] sm:$0xff] %v1530
        %2043 = vst [vmem:[%s251 + $0xfd0] sm:$0xff] %v1531
        %2044 = vst [vmem:[%s251 + $0xfd8] sm:$0xff] %v1532
        %2045 = vst [vmem:[%s251 + $0xfe0] sm:$0xff] %v1533
        %2046 = vst [vmem:[%s251 + $0xfe8] sm:$0xff] %v1534
        %2047 = vst [vmem:[%s251 + $0xff0] sm:$0xff] %v1535
        %2048 = vst [vmem:[%s251 + $0xff8] sm:$0xff] %v1536
        %s2049 = sand.u32 %s98, 1
        %s2050 = scalar_lea.sflag [#allocation4], %s2049
        %s2051 = sand.u32 %s98, 1
        %s2052 = smul.addr %s2051, 4096
        %s2053 = scalar_lea.vmem [#allocation7], %s2052
        // Predicated region
        $region37: #{tpu_custom_call.1} parent=27 // pred_check
          %p2054 = pneg %p108
        $region38: #{tpu_custom_call.1} parent=27 // pred_check_branch
          %2056 = sbr.rel (%p2054) target = $region40
        $region39: #{tpu_custom_call.1} parent=27 // pred_region
          #allocation11 [shape = 'u32[6]{0}', space=smem, size = 0x18, scoped, tag = 'DMA stride descriptor']
          %s2057 = smul.u32 2, %s27
          %s2058 = smul.u32 64, %s26
          %2060 = vsyncadd %s2050, 0
          %s2061 = smul.addr %s2058, 4
          %s2062 = smul.addr %s2057, 512
          %s2063 = sadd.s32 %s2061, %s2062
          %s2064 = smul.addr %s2063, 8
          %s2065 = scalar_lea.hbm %s2, %s2064
          %s2067 = sshll.u32 1, 14
          %s2068 = sxor.u32 4294967295, %s2067
          %s2071 = sshll.u32 7, 18
          %s2072 = sxor.u32 4294967295, %s2071
          %s2073 = sand.u32 0, %s2072
          %s2075 = sor.u32 %s2073, 0
          %s2076 = sshll.u32 %s2053, 4
          %s2077 = int_to_ptr.vmem [resolvable:$true] %s2076
          %s2078 = sshll.u32 %s2065, 4
          %s2079 = int_to_ptr.hbm [resolvable:$true] %s2078
          %2085 = sst [smem:[#allocation11]] 32768
          %s2086 = scalar_lea.smem [#allocation11], 1
          %2087 = sst [smem:[%s2086]] 65536
          %s2088 = scalar_lea.smem [#allocation11], 2
          %2089 = sst [smem:[%s2088]] 64
          %s2090 = scalar_lea.smem [#allocation11], 3
          %2091 = sst [smem:[%s2090]] 512
          %s2092 = scalar_lea.smem [#allocation11], 4
          %2093 = sst [smem:[%s2092]] 512
          %s2094 = scalar_lea.smem [#allocation11], 5
          %2095 = sst [smem:[%s2094]] 32
          %2097 = dma.general %s2077, 65536, %s2079, %s2050, [#allocation10], [#allocation11], %s2075, 0
        $region40: #{tpu_custom_call.1} parent=27 // pred_fallthru
          _
      $region28: #{tpu_custom_call.1} parent=5 // pred_fallthru
        _
      %p2098 = scmp.le.s32.totalorder 2, %s17
      // Predicated region
      $region41: #{tpu_custom_call.1} parent=5 // pred_check
        %p2099 = pneg %p2098
      $region42: #{tpu_custom_call.1} parent=5 // pred_check_branch
        %2101 = sbr.rel (%p2099) target = $region44
      $region43: #{tpu_custom_call.1} parent=5 // pred_region
        %s2102 = ssub.s32 %s17, 2
        // Predicated region
        $region45: #{tpu_custom_call.1} parent=43 // pred_check
          %p2103 = pneg %p114
        $region46: #{tpu_custom_call.1} parent=43 // pred_check_branch
          %2105 = sbr.rel (%p2103) target = $region48
        $region47: #{tpu_custom_call.1} parent=43 // pred_region
          %s2106 = sand.u32 %s99, 1
          %s2107 = scalar_lea.sflag [#allocation4], %s2106
          %s2108 = sand.u32 %s99, 1
          %s2109 = smul.addr %s2108, 4096
          %s2110 = scalar_lea.vmem [#allocation7], %s2109
          %2112 = dma.done %s2107, 65536
        $region48: #{tpu_custom_call.1} parent=43 // pred_fallthru
          _
      $region44: #{tpu_custom_call.1} parent=5 // pred_fallthru
        _
    $region6: #{tpu_custom_call.1} parent=1 // loop_footer
      %s21 = sadd.s32 1, %s17
    $region7: #{tpu_custom_call.1} parent=1 // loop_footer_branch
      %16 = sbr.rel target = $region3
    $region8: #{tpu_custom_call.1} parent=1 // loop_exit
      _
    %2113 = vsyncpa [#allocation3], 1
    %s2114 = scalar_lea.sflag [#allocation3], 1
    %2115 = vsyncpa %s2114, 1
    %2116 = vsyncpa [#allocation6], 1
    %s2117 = scalar_lea.sflag [#allocation6], 1
    %2118 = vsyncpa %s2117, 1
    %2119 = vsyncpa [#allocation4], 1
    %s2120 = scalar_lea.sflag [#allocation4], 1
    %2121 = vsyncpa %s2120, 1

</llo_original>
